<compile_context>
chip_gen: v7x
topology: tpu7x:2x2x1
jax: 0.10.0
libtpu: 0.0.40
codegen_flags: <defaults>
</compile_context>

<pallas_src>
import jax
import jax.numpy as jnp
from jax.experimental import pallas as pl
from jax.experimental.pallas import tpu as pltpu

_BATCH_TILE = 8  # sublane-aligned batch tile (grid unit)


def temporal_realnvp_kernel(z_ref, tc_ref, const_ref, gruw_ref, out_ref):
    f32 = jnp.float32
    bf16 = jnp.bfloat16

    BT, L = z_ref.shape
    H = L // 2
    TB = tc_ref.shape[0]
    T = TB // BT

    consts = const_ref[...]                       # [H+5+T, 3H] f32 (tiny slab)
    gruw = gruw_ref[...]                          # [3H, 3H]  bf16

    cplw = consts[0:H, 0:2 * H]                   # [H, 2H]  Ws^T | Wt^T
    freqs = consts[H:H + 1, 0:H]                  # [1, H]
    cplb = consts[H + 1:H + 2, 0:2 * H]           # [1, 2H]  bs | bt
    gib = consts[H + 2:H + 3, :]                  # [1, 3H]  bih + (bhh_r|bhh_z|0)
    bhn = consts[H + 3:H + 4, 0:H]                # [1, H]   bhh_n
    projw = consts[H + 4:, 0:H]                   # [T+1, H] wproj rows + bproj row

    wih = gruw[0:2 * H, :]                        # [2H, 3H] input-side (sin|cos rows)
    whh = gruw[2 * H:, :]                         # [H, 3H]  hidden-side (fused gates)

    z = z_ref[...]
    z1 = z[:, :H]
    z2 = z[:, H:]

    # ---- affine coupling, single fused dot: [s|t] = z1 @ [Ws^T|Wt^T] + [bs|bt]
    st = jnp.dot(z1, cplw, preferred_element_type=f32) + cplb
    z2 = jax.nn.sigmoid(st[:, :H]) * z2 + st[:, H:]

    # ---- Fourier embedding + input-side GRU gates, hoisted out of the
    #      recurrence and fused into ONE [T*BT,2H]x[2H,3H] dot.
    phase = tc_ref[...] * freqs                   # [T*BT,1]*[1,H] -> [T*BT,H]
    sc = jnp.concatenate([jnp.sin(phase), jnp.cos(phase)],
                         axis=1).astype(bf16)     # [T*BT, 2H] bf16 MXU operand
    gi = jnp.dot(sc, wih, preferred_element_type=f32) + gib       # [T*BT, 3H]

    # ---- GRU recurrence: ONE fused [BT,H]x[H,3H] dot per step on the serial
    #      chain; gate split is lane slicing (offsets 0, H, 2H).
    # TODO(synk): on v5e/v6e, park the fused Whh in MXU weight registers across
    # the recurrence (pltpu.matmul_push_rhs / matmul_acc_lhs / matmul_pop)
    # instead of re-issuing jnp.dot each step; kept portable jnp.dot here.
    h = jnp.zeros((BT, H), f32)
    acc = jnp.zeros((BT, H), f32)
    for ti in range(T):                           # T static -> unrolled
        lo = ti * BT                              # BT == 8 -> sublane-aligned
        gi_t = gi[lo:lo + BT, :]
        gh = jnp.dot(h.astype(bf16), whh, preferred_element_type=f32)  # [BT,3H]
        r = jax.nn.sigmoid(gi_t[:, :H] + gh[:, :H])
        zg = jax.nn.sigmoid(gi_t[:, H:2 * H] + gh[:, H:2 * H])
        n = jnp.tanh(gi_t[:, 2 * H:] + r * (gh[:, 2 * H:] + bhn))
        h = (1.0 - zg) * n + zg * h
        acc = acc + h * projw[ti:ti + 1, :]       # time_projection weight row

    z2 = z2 + acc + projw[T:T + 1, :]             # + bproj row

    # Single full-width store (both halves live in the same vreg at 2H=16).
    out_ref[...] = jnp.concatenate([z1, z2], axis=1)


@jax.jit
def temporal_realnvp_flow(z, time_context, params):
    """One-time weight/layout plumbing + gridded pallas_call.

    z is padded to a multiple of the batch tile inside this jit, so the aliased
    output buffer is a jit intermediate (no defensive copy of the caller's z).
    Multiple independent flow instances can be concatenated along the batch
    axis before calling to amortize per-call overhead behind the grid.
    """
    B, L = z.shape
    H = L // 2
    T = time_context.shape[1]
    BT = _BATCH_TILE
    G = pl.cdiv(B, BT)
    Bp = G * BT
    H3 = 3 * H
    nrows = H + 5 + T

    # --- batch padded to a sublane-aligned tile ---
    z_pad = jnp.zeros((Bp, L), jnp.float32).at[:B, :].set(z)
    tc_pad = jnp.zeros((Bp, T), jnp.float32).at[:B, :].set(time_context)
    # time-major per batch tile: row (g, t, b) -> g*T*BT + t*BT + b
    tc_flat = tc_pad.reshape(G, BT, T).transpose(0, 2, 1).reshape(G * T * BT, 1)

    # --- one f32 constants slab (coupling W, biases, freqs, projection rows) ---
    bih, bhh = params["bih"][0], params["bhh"][0]
    consts = jnp.zeros((nrows, H3), jnp.float32)
    consts = consts.at[0:H, 0:2 * H].set(
        jnp.concatenate([params["Ws"].T, params["Wt"].T], axis=1))   # fused cpl W
    consts = consts.at[H, 0:H].set(params["freqs"][0])
    consts = consts.at[H + 1, 0:H].set(params["bs"][0])
    consts = consts.at[H + 1, H:2 * H].set(params["bt"][0])
    consts = consts.at[H + 2, 0:2 * H].set(bih[:2 * H] + bhh[:2 * H])  # r,z folded
    consts = consts.at[H + 2, 2 * H:].set(bih[2 * H:])                 # n input bias
    consts = consts.at[H + 3, 0:H].set(bhh[2 * H:])                    # n hidden bias
    consts = consts.at[H + 4:H + 4 + T, 0:H].set(
        jnp.broadcast_to(params["Wproj"][0][:, None], (T, H)))
    consts = consts.at[H + 4 + T, 0:H].set(
        jnp.broadcast_to(params["bproj"][0], (H,)))

    # --- one bf16 GRU slab: [Wih^T ; Whh^T], gate columns already r|z|n ---
    gruw = jnp.concatenate([params["Wih"].T, params["Whh"].T],
                           axis=0).astype(jnp.bfloat16)                # [3H, 3H]

    out = pl.pallas_call(
        temporal_realnvp_kernel,
        out_shape=jax.ShapeDtypeStruct((Bp, L), jnp.float32),
        grid=(G,),
        in_specs=[
            pl.BlockSpec((BT, L), lambda g: (g, 0)),          # z tile
            pl.BlockSpec((T * BT, 1), lambda g: (g, 0)),      # time-major tc tile
            pl.BlockSpec((nrows, H3), lambda g: (0, 0)),      # consts (resident)
            pl.BlockSpec((H3, H3), lambda g: (0, 0)),         # GRU weights (resident)
        ],
        out_specs=pl.BlockSpec((BT, L), lambda g: (g, 0)),
        input_output_aliases={0: 0},  # reuse padded-z buffer for the output
        compiler_params=pltpu.CompilerParams(
            dimension_semantics=("parallel",)),               # shards tiles on v7x
    )(z_pad, tc_flat, consts, gruw)
    return out[:B]


def reference_forward(z, time_context, params):
    """Pure-JAX f32 reference mirroring the PyTorch forward exactly."""
    B, L = z.shape
    H = L // 2
    z1, z2 = z[:, :H], z[:, H:]
    s = jax.nn.sigmoid(z1 @ params["Ws"].T + params["bs"][0])
    t = z1 @ params["Wt"].T + params["bt"][0]
    z2 = s * z2 + t

    # FourierTimeEmbedding
    sin_in = time_context[:, :, None] * params["freqs"][0][None, None, :]  # [B,T,H]
    te = jnp.concatenate([jnp.sin(sin_in), jnp.cos(sin_in)], axis=-1)       # [B,T,2H]

    # GRU (batch_first, h_0 = 0), gate order r, z, n
    Wih, bih = params["Wih"], params["bih"][0]
    Whh, bhh = params["Whh"], params["bhh"][0]
    T = time_context.shape[1]
    h = jnp.zeros((B, H), jnp.float32)
    outs = []
    for ti in range(T):
        x_t = te[:, ti, :]
        gi = x_t @ Wih.T + bih
        gh = h @ Whh.T + bhh
        r = jax.nn.sigmoid(gi[:, :H] + gh[:, :H])
        zg = jax.nn.sigmoid(gi[:, H:2 * H] + gh[:, H:2 * H])
        n = jnp.tanh(gi[:, 2 * H:] + r * gh[:, 2 * H:])
        h = (1.0 - zg) * n + zg * h
        outs.append(h)
    time_out = jnp.stack(outs, axis=1)                 # [B, T, H]
    time_out = jnp.transpose(time_out, (0, 2, 1))      # [B, H, T]
    proj = time_out @ params["Wproj"][0] + params["bproj"][0, 0]  # [B, H]
    z2 = z2 + proj
    return jnp.concatenate([z1, z2], axis=1)


def init_params(key, latent_dim, input_dim):
    H = latent_dim // 2
    T = input_dim
    ks = jax.random.split(key, 10)
    u = lambda k, shape, scale=0.2: jax.random.uniform(
        k, shape, jnp.float32, minval=-scale, maxval=scale)
    return {
        "Ws": u(ks[0], (H, H)),
        "bs": u(ks[1], (1, H)),
        "Wt": u(ks[2], (H, H)),
        "bt": u(ks[3], (1, H)),
        "Wih": u(ks[4], (3 * H, latent_dim)),
        "bih": u(ks[5], (1, 3 * H)),
        "Whh": u(ks[6], (3 * H, H)),
        "bhh": u(ks[7], (1, 3 * H)),
        "Wproj": u(ks[8], (1, T)),
        "bproj": u(ks[9], (1, 1)),
        # FourierTimeEmbedding buffer: exp(linspace(0, time_steps, latent_dim//2))
        "freqs": jnp.exp(jnp.linspace(0.0, float(T), H, dtype=jnp.float32))[None, :],
    }


if __name__ == "__main__":
    latent_dim = 16   # -> H = 8
    input_dim = 8     # -> T = 8 (time steps / GRU sequence length)
    batch = 4

    key = jax.random.PRNGKey(0)
    kz, kp = jax.random.split(key)

    z = jax.random.normal(kz, (batch, latent_dim), dtype=jnp.float32)
    # integer time indices as float32 (matches PyTorch int * float-freqs promotion)
    time_context = jnp.tile(
        jnp.arange(input_dim, dtype=jnp.float32)[None, :], (batch, 1))

    params = init_params(kp, latent_dim, input_dim)

    out = jax.block_until_ready(temporal_realnvp_flow(z, time_context, params))
    ref = jax.block_until_ready(reference_forward(z, time_context, params))

    assert out.shape == (batch, latent_dim), out.shape
    assert bool(jnp.all(jnp.isfinite(out)))
    # Tolerance covers bf16 MXU operands (f32 accumulation) + transcendental
    # lowering differences between Mosaic and the XLA reference.
    assert jnp.allclose(out, ref, rtol=5e-2, atol=5e-2), (
        float(jnp.max(jnp.abs(out - ref))))

    print("KERNEL_OK")
</pallas_src>

<mosaic_0001>
module attributes {stable_mosaic.version = 11 : i64} {
  func.func @temporal_realnvp_kernel(%arg0: i32, %arg1: memref<8x16xf32, #tpu.memory_space<vmem>>, %arg2: memref<64x1xf32, #tpu.memory_space<vmem>>, %arg3: memref<21x24xf32, #tpu.memory_space<vmem>>, %arg4: memref<24x24xbf16, #tpu.memory_space<vmem>>, %arg5: memref<8x16xf32, #tpu.memory_space<vmem>>) attributes {dimension_semantics = [#tpu.dimension_semantics<parallel>], iteration_bounds = array<i64: 1>, scalar_prefetch = 0 : i64, scratch_operands = 0 : i64, tpu.core_type = #tpu.core_type<tc>, window_params = [{transform_indices = @transform_0, window_bounds = array<i64: 8, 16>}, {transform_indices = @transform_1, window_bounds = array<i64: 64, 1>}, {pipeline_mode = #tpu.pipeline_mode<synchronous>, transform_indices = @transform_2, window_bounds = array<i64: 21, 24>}, {pipeline_mode = #tpu.pipeline_mode<synchronous>, transform_indices = @transform_3, window_bounds = array<i64: 24, 24>}, {transform_indices = @transform_4, window_bounds = array<i64: 8, 16>}]} {
    %c0 = arith.constant 0 : index
    %c0_0 = arith.constant 0 : index
    %0 = vector.load %arg3[%c0, %c0_0] : memref<21x24xf32, #tpu.memory_space<vmem>>, vector<21x24xf32>
    %c0_1 = arith.constant 0 : index
    %c0_2 = arith.constant 0 : index
    %1 = vector.load %arg4[%c0_1, %c0_2] : memref<24x24xbf16, #tpu.memory_space<vmem>>, vector<24x24xbf16>
    %2 = vector.extract_strided_slice %0 {offsets = [0, 0], sizes = [8, 16], strides = [1, 1]} : vector<21x24xf32> to vector<8x16xf32>
    %3 = vector.extract_strided_slice %0 {offsets = [8, 0], sizes = [1, 8], strides = [1, 1]} : vector<21x24xf32> to vector<1x8xf32>
    %4 = vector.extract_strided_slice %0 {offsets = [9, 0], sizes = [1, 16], strides = [1, 1]} : vector<21x24xf32> to vector<1x16xf32>
    %5 = vector.extract_strided_slice %0 {offsets = [10, 0], sizes = [1, 24], strides = [1, 1]} : vector<21x24xf32> to vector<1x24xf32>
    %6 = vector.extract_strided_slice %0 {offsets = [11, 0], sizes = [1, 8], strides = [1, 1]} : vector<21x24xf32> to vector<1x8xf32>
    %7 = vector.extract_strided_slice %0 {offsets = [12, 0], sizes = [9, 8], strides = [1, 1]} : vector<21x24xf32> to vector<9x8xf32>
    %8 = vector.extract_strided_slice %1 {offsets = [0, 0], sizes = [16, 24], strides = [1, 1]} : vector<24x24xbf16> to vector<16x24xbf16>
    %9 = vector.extract_strided_slice %1 {offsets = [16, 0], sizes = [8, 24], strides = [1, 1]} : vector<24x24xbf16> to vector<8x24xbf16>
    %c0_3 = arith.constant 0 : index
    %c0_4 = arith.constant 0 : index
    %10 = vector.load %arg1[%c0_3, %c0_4] : memref<8x16xf32, #tpu.memory_space<vmem>>, vector<8x16xf32>
    %11 = vector.extract_strided_slice %10 {offsets = [0, 0], sizes = [8, 8], strides = [1, 1]} : vector<8x16xf32> to vector<8x8xf32>
    %12 = vector.extract_strided_slice %10 {offsets = [0, 8], sizes = [8, 8], strides = [1, 1]} : vector<8x16xf32> to vector<8x8xf32>
    %cst = arith.constant dense<0.000000e+00> : vector<8x16xf32>
    %13 = tpu.matmul %11, %2, %cst {dimension_numbers = #tpu.dot_dimension_numbers<[1], [0], [0], [1], [0, 0, 1, 1], [], []>} : vector<8x8xf32>, vector<8x16xf32>, vector<8x16xf32> -> vector<8x16xf32>
    %14 = vector.broadcast %4 : vector<1x16xf32> to vector<8x16xf32>
    %15 = arith.addf %13, %14 : vector<8x16xf32>
    %16 = vector.extract_strided_slice %15 {offsets = [0, 0], sizes = [8, 8], strides = [1, 1]} : vector<8x16xf32> to vector<8x8xf32>
    %17 = arith.negf %16 : vector<8x8xf32>
    %18 = math.exp %17 : vector<8x8xf32>
    %cst_5 = arith.constant 1.000000e+00 : f32
    %19 = vector.broadcast %cst_5 : f32 to vector<8x8xf32>
    %20 = arith.addf %19, %18 : vector<8x8xf32>
    %21 = arith.divf %19, %20 : vector<8x8xf32>
    %22 = arith.mulf %21, %12 : vector<8x8xf32>
    %23 = vector.extract_strided_slice %15 {offsets = [0, 8], sizes = [8, 8], strides = [1, 1]} : vector<8x16xf32> to vector<8x8xf32>
    %24 = arith.addf %22, %23 : vector<8x8xf32>
    %c0_6 = arith.constant 0 : index
    %c0_7 = arith.constant 0 : index
    %25 = vector.load %arg2[%c0_6, %c0_7] : memref<64x1xf32, #tpu.memory_space<vmem>>, vector<64x1xf32>
    %26 = vector.broadcast %25 : vector<64x1xf32> to vector<64x8xf32>
    %27 = vector.broadcast %3 : vector<1x8xf32> to vector<64x8xf32>
    %28 = arith.mulf %26, %27 : vector<64x8xf32>
    %29 = math.sin %28 : vector<64x8xf32>
    %30 = math.cos %28 : vector<64x8xf32>
    %31 = tpu.concatenate %29, %30 in 1 : vector<64x8xf32>, vector<64x8xf32> -> vector<64x16xf32>
    %32 = arith.truncf %31 : vector<64x16xf32> to vector<64x16xbf16>
    %cst_8 = arith.constant dense<0.000000e+00> : vector<64x24xf32>
    %33 = tpu.matmul %32, %8, %cst_8 {dimension_numbers = #tpu.dot_dimension_numbers<[1], [0], [0], [1], [0, 0, 1, 1], [], []>} : vector<64x16xbf16>, vector<16x24xbf16>, vector<64x24xf32> -> vector<64x24xf32>
    %34 = vector.broadcast %5 : vector<1x24xf32> to vector<64x24xf32>
    %35 = arith.addf %33, %34 : vector<64x24xf32>
    %cst_9 = arith.constant 0.000000e+00 : f32
    %36 = vector.broadcast %cst_9 : f32 to vector<8x8xf32>
    %cst_10 = arith.constant 0.000000e+00 : f32
    %37 = vector.broadcast %cst_10 : f32 to vector<8x8xf32>
    %38 = vector.extract_strided_slice %35 {offsets = [0, 0], sizes = [8, 24], strides = [1, 1]} : vector<64x24xf32> to vector<8x24xf32>
    %39 = arith.truncf %36 : vector<8x8xf32> to vector<8x8xbf16>
    %cst_11 = arith.constant dense<0.000000e+00> : vector<8x24xf32>
    %40 = tpu.matmul %39, %9, %cst_11 {dimension_numbers = #tpu.dot_dimension_numbers<[1], [0], [0], [1], [0, 0, 1, 1], [], []>} : vector<8x8xbf16>, vector<8x24xbf16>, vector<8x24xf32> -> vector<8x24xf32>
    %41 = vector.extract_strided_slice %38 {offsets = [0, 0], sizes = [8, 8], strides = [1, 1]} : vector<8x24xf32> to vector<8x8xf32>
    %42 = vector.extract_strided_slice %40 {offsets = [0, 0], sizes = [8, 8], strides = [1, 1]} : vector<8x24xf32> to vector<8x8xf32>
    %43 = arith.addf %41, %42 : vector<8x8xf32>
    %44 = arith.negf %43 : vector<8x8xf32>
    %45 = math.exp %44 : vector<8x8xf32>
    %cst_12 = arith.constant 1.000000e+00 : f32
    %46 = vector.broadcast %cst_12 : f32 to vector<8x8xf32>
    %47 = arith.addf %46, %45 : vector<8x8xf32>
    %48 = arith.divf %46, %47 : vector<8x8xf32>
    %49 = vector.extract_strided_slice %38 {offsets = [0, 8], sizes = [8, 8], strides = [1, 1]} : vector<8x24xf32> to vector<8x8xf32>
    %50 = vector.extract_strided_slice %40 {offsets = [0, 8], sizes = [8, 8], strides = [1, 1]} : vector<8x24xf32> to vector<8x8xf32>
    %51 = arith.addf %49, %50 : vector<8x8xf32>
    %52 = arith.negf %51 : vector<8x8xf32>
    %53 = math.exp %52 : vector<8x8xf32>
    %cst_13 = arith.constant 1.000000e+00 : f32
    %54 = vector.broadcast %cst_13 : f32 to vector<8x8xf32>
    %55 = arith.addf %54, %53 : vector<8x8xf32>
    %56 = arith.divf %54, %55 : vector<8x8xf32>
    %57 = vector.extract_strided_slice %38 {offsets = [0, 16], sizes = [8, 8], strides = [1, 1]} : vector<8x24xf32> to vector<8x8xf32>
    %58 = vector.extract_strided_slice %40 {offsets = [0, 16], sizes = [8, 8], strides = [1, 1]} : vector<8x24xf32> to vector<8x8xf32>
    %59 = vector.broadcast %6 : vector<1x8xf32> to vector<8x8xf32>
    %60 = arith.addf %58, %59 : vector<8x8xf32>
    %61 = arith.mulf %48, %60 : vector<8x8xf32>
    %62 = arith.addf %57, %61 : vector<8x8xf32>
    %63 = math.tanh %62 : vector<8x8xf32>
    %cst_14 = arith.constant 1.000000e+00 : f32
    %64 = vector.broadcast %cst_14 : f32 to vector<8x8xf32>
    %65 = arith.subf %64, %56 : vector<8x8xf32>
    %66 = arith.mulf %65, %63 : vector<8x8xf32>
    %67 = arith.mulf %56, %36 : vector<8x8xf32>
    %68 = arith.addf %66, %67 : vector<8x8xf32>
    %69 = vector.extract_strided_slice %7 {offsets = [0, 0], sizes = [1, 8], strides = [1, 1]} : vector<9x8xf32> to vector<1x8xf32>
    %70 = vector.broadcast %69 : vector<1x8xf32> to vector<8x8xf32>
    %71 = arith.mulf %68, %70 : vector<8x8xf32>
    %72 = arith.addf %37, %71 : vector<8x8xf32>
    %73 = vector.extract_strided_slice %35 {offsets = [8, 0], sizes = [8, 24], strides = [1, 1]} : vector<64x24xf32> to vector<8x24xf32>
    %74 = arith.truncf %68 : vector<8x8xf32> to vector<8x8xbf16>
    %cst_15 = arith.constant dense<0.000000e+00> : vector<8x24xf32>
    %75 = tpu.matmul %74, %9, %cst_15 {dimension_numbers = #tpu.dot_dimension_numbers<[1], [0], [0], [1], [0, 0, 1, 1], [], []>} : vector<8x8xbf16>, vector<8x24xbf16>, vector<8x24xf32> -> vector<8x24xf32>
    %76 = vector.extract_strided_slice %73 {offsets = [0, 0], sizes = [8, 8], strides = [1, 1]} : vector<8x24xf32> to vector<8x8xf32>
    %77 = vector.extract_strided_slice %75 {offsets = [0, 0], sizes = [8, 8], strides = [1, 1]} : vector<8x24xf32> to vector<8x8xf32>
    %78 = arith.addf %76, %77 : vector<8x8xf32>
    %79 = arith.negf %78 : vector<8x8xf32>
    %80 = math.exp %79 : vector<8x8xf32>
    %cst_16 = arith.constant 1.000000e+00 : f32
    %81 = vector.broadcast %cst_16 : f32 to vector<8x8xf32>
    %82 = arith.addf %81, %80 : vector<8x8xf32>
    %83 = arith.divf %81, %82 : vector<8x8xf32>
    %84 = vector.extract_strided_slice %73 {offsets = [0, 8], sizes = [8, 8], strides = [1, 1]} : vector<8x24xf32> to vector<8x8xf32>
    %85 = vector.extract_strided_slice %75 {offsets = [0, 8], sizes = [8, 8], strides = [1, 1]} : vector<8x24xf32> to vector<8x8xf32>
    %86 = arith.addf %84, %85 : vector<8x8xf32>
    %87 = arith.negf %86 : vector<8x8xf32>
    %88 = math.exp %87 : vector<8x8xf32>
    %cst_17 = arith.constant 1.000000e+00 : f32
    %89 = vector.broadcast %cst_17 : f32 to vector<8x8xf32>
    %90 = arith.addf %89, %88 : vector<8x8xf32>
    %91 = arith.divf %89, %90 : vector<8x8xf32>
    %92 = vector.extract_strided_slice %73 {offsets = [0, 16], sizes = [8, 8], strides = [1, 1]} : vector<8x24xf32> to vector<8x8xf32>
    %93 = vector.extract_strided_slice %75 {offsets = [0, 16], sizes = [8, 8], strides = [1, 1]} : vector<8x24xf32> to vector<8x8xf32>
    %94 = vector.broadcast %6 : vector<1x8xf32> to vector<8x8xf32>
    %95 = arith.addf %93, %94 : vector<8x8xf32>
    %96 = arith.mulf %83, %95 : vector<8x8xf32>
    %97 = arith.addf %92, %96 : vector<8x8xf32>
    %98 = math.tanh %97 : vector<8x8xf32>
    %cst_18 = arith.constant 1.000000e+00 : f32
    %99 = vector.broadcast %cst_18 : f32 to vector<8x8xf32>
    %100 = arith.subf %99, %91 : vector<8x8xf32>
    %101 = arith.mulf %100, %98 : vector<8x8xf32>
    %102 = arith.mulf %91, %68 : vector<8x8xf32>
    %103 = arith.addf %101, %102 : vector<8x8xf32>
    %104 = vector.extract_strided_slice %7 {offsets = [1, 0], sizes = [1, 8], strides = [1, 1]} : vector<9x8xf32> to vector<1x8xf32>
    %105 = vector.broadcast %104 : vector<1x8xf32> to vector<8x8xf32>
    %106 = arith.mulf %103, %105 : vector<8x8xf32>
    %107 = arith.addf %72, %106 : vector<8x8xf32>
    %108 = vector.extract_strided_slice %35 {offsets = [16, 0], sizes = [8, 24], strides = [1, 1]} : vector<64x24xf32> to vector<8x24xf32>
    %109 = arith.truncf %103 : vector<8x8xf32> to vector<8x8xbf16>
    %cst_19 = arith.constant dense<0.000000e+00> : vector<8x24xf32>
    %110 = tpu.matmul %109, %9, %cst_19 {dimension_numbers = #tpu.dot_dimension_numbers<[1], [0], [0], [1], [0, 0, 1, 1], [], []>} : vector<8x8xbf16>, vector<8x24xbf16>, vector<8x24xf32> -> vector<8x24xf32>
    %111 = vector.extract_strided_slice %108 {offsets = [0, 0], sizes = [8, 8], strides = [1, 1]} : vector<8x24xf32> to vector<8x8xf32>
    %112 = vector.extract_strided_slice %110 {offsets = [0, 0], sizes = [8, 8], strides = [1, 1]} : vector<8x24xf32> to vector<8x8xf32>
    %113 = arith.addf %111, %112 : vector<8x8xf32>
    %114 = arith.negf %113 : vector<8x8xf32>
    %115 = math.exp %114 : vector<8x8xf32>
    %cst_20 = arith.constant 1.000000e+00 : f32
    %116 = vector.broadcast %cst_20 : f32 to vector<8x8xf32>
    %117 = arith.addf %116, %115 : vector<8x8xf32>
    %118 = arith.divf %116, %117 : vector<8x8xf32>
    %119 = vector.extract_strided_slice %108 {offsets = [0, 8], sizes = [8, 8], strides = [1, 1]} : vector<8x24xf32> to vector<8x8xf32>
    %120 = vector.extract_strided_slice %110 {offsets = [0, 8], sizes = [8, 8], strides = [1, 1]} : vector<8x24xf32> to vector<8x8xf32>
    %121 = arith.addf %119, %120 : vector<8x8xf32>
    %122 = arith.negf %121 : vector<8x8xf32>
    %123 = math.exp %122 : vector<8x8xf32>
    %cst_21 = arith.constant 1.000000e+00 : f32
    %124 = vector.broadcast %cst_21 : f32 to vector<8x8xf32>
    %125 = arith.addf %124, %123 : vector<8x8xf32>
    %126 = arith.divf %124, %125 : vector<8x8xf32>
    %127 = vector.extract_strided_slice %108 {offsets = [0, 16], sizes = [8, 8], strides = [1, 1]} : vector<8x24xf32> to vector<8x8xf32>
    %128 = vector.extract_strided_slice %110 {offsets = [0, 16], sizes = [8, 8], strides = [1, 1]} : vector<8x24xf32> to vector<8x8xf32>
    %129 = vector.broadcast %6 : vector<1x8xf32> to vector<8x8xf32>
    %130 = arith.addf %128, %129 : vector<8x8xf32>
    %131 = arith.mulf %118, %130 : vector<8x8xf32>
    %132 = arith.addf %127, %131 : vector<8x8xf32>
    %133 = math.tanh %132 : vector<8x8xf32>
    %cst_22 = arith.constant 1.000000e+00 : f32
    %134 = vector.broadcast %cst_22 : f32 to vector<8x8xf32>
    %135 = arith.subf %134, %126 : vector<8x8xf32>
    %136 = arith.mulf %135, %133 : vector<8x8xf32>
    %137 = arith.mulf %126, %103 : vector<8x8xf32>
    %138 = arith.addf %136, %137 : vector<8x8xf32>
    %139 = vector.extract_strided_slice %7 {offsets = [2, 0], sizes = [1, 8], strides = [1, 1]} : vector<9x8xf32> to vector<1x8xf32>
    %140 = vector.broadcast %139 : vector<1x8xf32> to vector<8x8xf32>
    %141 = arith.mulf %138, %140 : vector<8x8xf32>
    %142 = arith.addf %107, %141 : vector<8x8xf32>
    %143 = vector.extract_strided_slice %35 {offsets = [24, 0], sizes = [8, 24], strides = [1, 1]} : vector<64x24xf32> to vector<8x24xf32>
    %144 = arith.truncf %138 : vector<8x8xf32> to vector<8x8xbf16>
    %cst_23 = arith.constant dense<0.000000e+00> : vector<8x24xf32>
    %145 = tpu.matmul %144, %9, %cst_23 {dimension_numbers = #tpu.dot_dimension_numbers<[1], [0], [0], [1], [0, 0, 1, 1], [], []>} : vector<8x8xbf16>, vector<8x24xbf16>, vector<8x24xf32> -> vector<8x24xf32>
    %146 = vector.extract_strided_slice %143 {offsets = [0, 0], sizes = [8, 8], strides = [1, 1]} : vector<8x24xf32> to vector<8x8xf32>
    %147 = vector.extract_strided_slice %145 {offsets = [0, 0], sizes = [8, 8], strides = [1, 1]} : vector<8x24xf32> to vector<8x8xf32>
    %148 = arith.addf %146, %147 : vector<8x8xf32>
    %149 = arith.negf %148 : vector<8x8xf32>
    %150 = math.exp %149 : vector<8x8xf32>
    %cst_24 = arith.constant 1.000000e+00 : f32
    %151 = vector.broadcast %cst_24 : f32 to vector<8x8xf32>
    %152 = arith.addf %151, %150 : vector<8x8xf32>
    %153 = arith.divf %151, %152 : vector<8x8xf32>
    %154 = vector.extract_strided_slice %143 {offsets = [0, 8], sizes = [8, 8], strides = [1, 1]} : vector<8x24xf32> to vector<8x8xf32>
    %155 = vector.extract_strided_slice %145 {offsets = [0, 8], sizes = [8, 8], strides = [1, 1]} : vector<8x24xf32> to vector<8x8xf32>
    %156 = arith.addf %154, %155 : vector<8x8xf32>
    %157 = arith.negf %156 : vector<8x8xf32>
    %158 = math.exp %157 : vector<8x8xf32>
    %cst_25 = arith.constant 1.000000e+00 : f32
    %159 = vector.broadcast %cst_25 : f32 to vector<8x8xf32>
    %160 = arith.addf %159, %158 : vector<8x8xf32>
    %161 = arith.divf %159, %160 : vector<8x8xf32>
    %162 = vector.extract_strided_slice %143 {offsets = [0, 16], sizes = [8, 8], strides = [1, 1]} : vector<8x24xf32> to vector<8x8xf32>
    %163 = vector.extract_strided_slice %145 {offsets = [0, 16], sizes = [8, 8], strides = [1, 1]} : vector<8x24xf32> to vector<8x8xf32>
    %164 = vector.broadcast %6 : vector<1x8xf32> to vector<8x8xf32>
    %165 = arith.addf %163, %164 : vector<8x8xf32>
    %166 = arith.mulf %153, %165 : vector<8x8xf32>
    %167 = arith.addf %162, %166 : vector<8x8xf32>
    %168 = math.tanh %167 : vector<8x8xf32>
    %cst_26 = arith.constant 1.000000e+00 : f32
    %169 = vector.broadcast %cst_26 : f32 to vector<8x8xf32>
    %170 = arith.subf %169, %161 : vector<8x8xf32>
    %171 = arith.mulf %170, %168 : vector<8x8xf32>
    %172 = arith.mulf %161, %138 : vector<8x8xf32>
    %173 = arith.addf %171, %172 : vector<8x8xf32>
    %174 = vector.extract_strided_slice %7 {offsets = [3, 0], sizes = [1, 8], strides = [1, 1]} : vector<9x8xf32> to vector<1x8xf32>
    %175 = vector.broadcast %174 : vector<1x8xf32> to vector<8x8xf32>
    %176 = arith.mulf %173, %175 : vector<8x8xf32>
    %177 = arith.addf %142, %176 : vector<8x8xf32>
    %178 = vector.extract_strided_slice %35 {offsets = [32, 0], sizes = [8, 24], strides = [1, 1]} : vector<64x24xf32> to vector<8x24xf32>
    %179 = arith.truncf %173 : vector<8x8xf32> to vector<8x8xbf16>
    %cst_27 = arith.constant dense<0.000000e+00> : vector<8x24xf32>
    %180 = tpu.matmul %179, %9, %cst_27 {dimension_numbers = #tpu.dot_dimension_numbers<[1], [0], [0], [1], [0, 0, 1, 1], [], []>} : vector<8x8xbf16>, vector<8x24xbf16>, vector<8x24xf32> -> vector<8x24xf32>
    %181 = vector.extract_strided_slice %178 {offsets = [0, 0], sizes = [8, 8], strides = [1, 1]} : vector<8x24xf32> to vector<8x8xf32>
    %182 = vector.extract_strided_slice %180 {offsets = [0, 0], sizes = [8, 8], strides = [1, 1]} : vector<8x24xf32> to vector<8x8xf32>
    %183 = arith.addf %181, %182 : vector<8x8xf32>
    %184 = arith.negf %183 : vector<8x8xf32>
    %185 = math.exp %184 : vector<8x8xf32>
    %cst_28 = arith.constant 1.000000e+00 : f32
    %186 = vector.broadcast %cst_28 : f32 to vector<8x8xf32>
    %187 = arith.addf %186, %185 : vector<8x8xf32>
    %188 = arith.divf %186, %187 : vector<8x8xf32>
    %189 = vector.extract_strided_slice %178 {offsets = [0, 8], sizes = [8, 8], strides = [1, 1]} : vector<8x24xf32> to vector<8x8xf32>
    %190 = vector.extract_strided_slice %180 {offsets = [0, 8], sizes = [8, 8], strides = [1, 1]} : vector<8x24xf32> to vector<8x8xf32>
    %191 = arith.addf %189, %190 : vector<8x8xf32>
    %192 = arith.negf %191 : vector<8x8xf32>
    %193 = math.exp %192 : vector<8x8xf32>
    %cst_29 = arith.constant 1.000000e+00 : f32
    %194 = vector.broadcast %cst_29 : f32 to vector<8x8xf32>
    %195 = arith.addf %194, %193 : vector<8x8xf32>
    %196 = arith.divf %194, %195 : vector<8x8xf32>
    %197 = vector.extract_strided_slice %178 {offsets = [0, 16], sizes = [8, 8], strides = [1, 1]} : vector<8x24xf32> to vector<8x8xf32>
    %198 = vector.extract_strided_slice %180 {offsets = [0, 16], sizes = [8, 8], strides = [1, 1]} : vector<8x24xf32> to vector<8x8xf32>
    %199 = vector.broadcast %6 : vector<1x8xf32> to vector<8x8xf32>
    %200 = arith.addf %198, %199 : vector<8x8xf32>
    %201 = arith.mulf %188, %200 : vector<8x8xf32>
    %202 = arith.addf %197, %201 : vector<8x8xf32>
    %203 = math.tanh %202 : vector<8x8xf32>
    %cst_30 = arith.constant 1.000000e+00 : f32
    %204 = vector.broadcast %cst_30 : f32 to vector<8x8xf32>
    %205 = arith.subf %204, %196 : vector<8x8xf32>
    %206 = arith.mulf %205, %203 : vector<8x8xf32>
    %207 = arith.mulf %196, %173 : vector<8x8xf32>
    %208 = arith.addf %206, %207 : vector<8x8xf32>
    %209 = vector.extract_strided_slice %7 {offsets = [4, 0], sizes = [1, 8], strides = [1, 1]} : vector<9x8xf32> to vector<1x8xf32>
    %210 = vector.broadcast %209 : vector<1x8xf32> to vector<8x8xf32>
    %211 = arith.mulf %208, %210 : vector<8x8xf32>
    %212 = arith.addf %177, %211 : vector<8x8xf32>
    %213 = vector.extract_strided_slice %35 {offsets = [40, 0], sizes = [8, 24], strides = [1, 1]} : vector<64x24xf32> to vector<8x24xf32>
    %214 = arith.truncf %208 : vector<8x8xf32> to vector<8x8xbf16>
    %cst_31 = arith.constant dense<0.000000e+00> : vector<8x24xf32>
    %215 = tpu.matmul %214, %9, %cst_31 {dimension_numbers = #tpu.dot_dimension_numbers<[1], [0], [0], [1], [0, 0, 1, 1], [], []>} : vector<8x8xbf16>, vector<8x24xbf16>, vector<8x24xf32> -> vector<8x24xf32>
    %216 = vector.extract_strided_slice %213 {offsets = [0, 0], sizes = [8, 8], strides = [1, 1]} : vector<8x24xf32> to vector<8x8xf32>
    %217 = vector.extract_strided_slice %215 {offsets = [0, 0], sizes = [8, 8], strides = [1, 1]} : vector<8x24xf32> to vector<8x8xf32>
    %218 = arith.addf %216, %217 : vector<8x8xf32>
    %219 = arith.negf %218 : vector<8x8xf32>
    %220 = math.exp %219 : vector<8x8xf32>
    %cst_32 = arith.constant 1.000000e+00 : f32
    %221 = vector.broadcast %cst_32 : f32 to vector<8x8xf32>
    %222 = arith.addf %221, %220 : vector<8x8xf32>
    %223 = arith.divf %221, %222 : vector<8x8xf32>
    %224 = vector.extract_strided_slice %213 {offsets = [0, 8], sizes = [8, 8], strides = [1, 1]} : vector<8x24xf32> to vector<8x8xf32>
    %225 = vector.extract_strided_slice %215 {offsets = [0, 8], sizes = [8, 8], strides = [1, 1]} : vector<8x24xf32> to vector<8x8xf32>
    %226 = arith.addf %224, %225 : vector<8x8xf32>
    %227 = arith.negf %226 : vector<8x8xf32>
    %228 = math.exp %227 : vector<8x8xf32>
    %cst_33 = arith.constant 1.000000e+00 : f32
    %229 = vector.broadcast %cst_33 : f32 to vector<8x8xf32>
    %230 = arith.addf %229, %228 : vector<8x8xf32>
    %231 = arith.divf %229, %230 : vector<8x8xf32>
    %232 = vector.extract_strided_slice %213 {offsets = [0, 16], sizes = [8, 8], strides = [1, 1]} : vector<8x24xf32> to vector<8x8xf32>
    %233 = vector.extract_strided_slice %215 {offsets = [0, 16], sizes = [8, 8], strides = [1, 1]} : vector<8x24xf32> to vector<8x8xf32>
    %234 = vector.broadcast %6 : vector<1x8xf32> to vector<8x8xf32>
    %235 = arith.addf %233, %234 : vector<8x8xf32>
    %236 = arith.mulf %223, %235 : vector<8x8xf32>
    %237 = arith.addf %232, %236 : vector<8x8xf32>
    %238 = math.tanh %237 : vector<8x8xf32>
    %cst_34 = arith.constant 1.000000e+00 : f32
    %239 = vector.broadcast %cst_34 : f32 to vector<8x8xf32>
    %240 = arith.subf %239, %231 : vector<8x8xf32>
    %241 = arith.mulf %240, %238 : vector<8x8xf32>
    %242 = arith.mulf %231, %208 : vector<8x8xf32>
    %243 = arith.addf %241, %242 : vector<8x8xf32>
    %244 = vector.extract_strided_slice %7 {offsets = [5, 0], sizes = [1, 8], strides = [1, 1]} : vector<9x8xf32> to vector<1x8xf32>
    %245 = vector.broadcast %244 : vector<1x8xf32> to vector<8x8xf32>
    %246 = arith.mulf %243, %245 : vector<8x8xf32>
    %247 = arith.addf %212, %246 : vector<8x8xf32>
    %248 = vector.extract_strided_slice %35 {offsets = [48, 0], sizes = [8, 24], strides = [1, 1]} : vector<64x24xf32> to vector<8x24xf32>
    %249 = arith.truncf %243 : vector<8x8xf32> to vector<8x8xbf16>
    %cst_35 = arith.constant dense<0.000000e+00> : vector<8x24xf32>
    %250 = tpu.matmul %249, %9, %cst_35 {dimension_numbers = #tpu.dot_dimension_numbers<[1], [0], [0], [1], [0, 0, 1, 1], [], []>} : vector<8x8xbf16>, vector<8x24xbf16>, vector<8x24xf32> -> vector<8x24xf32>
    %251 = vector.extract_strided_slice %248 {offsets = [0, 0], sizes = [8, 8], strides = [1, 1]} : vector<8x24xf32> to vector<8x8xf32>
    %252 = vector.extract_strided_slice %250 {offsets = [0, 0], sizes = [8, 8], strides = [1, 1]} : vector<8x24xf32> to vector<8x8xf32>
    %253 = arith.addf %251, %252 : vector<8x8xf32>
    %254 = arith.negf %253 : vector<8x8xf32>
    %255 = math.exp %254 : vector<8x8xf32>
    %cst_36 = arith.constant 1.000000e+00 : f32
    %256 = vector.broadcast %cst_36 : f32 to vector<8x8xf32>
    %257 = arith.addf %256, %255 : vector<8x8xf32>
    %258 = arith.divf %256, %257 : vector<8x8xf32>
    %259 = vector.extract_strided_slice %248 {offsets = [0, 8], sizes = [8, 8], strides = [1, 1]} : vector<8x24xf32> to vector<8x8xf32>
    %260 = vector.extract_strided_slice %250 {offsets = [0, 8], sizes = [8, 8], strides = [1, 1]} : vector<8x24xf32> to vector<8x8xf32>
    %261 = arith.addf %259, %260 : vector<8x8xf32>
    %262 = arith.negf %261 : vector<8x8xf32>
    %263 = math.exp %262 : vector<8x8xf32>
    %cst_37 = arith.constant 1.000000e+00 : f32
    %264 = vector.broadcast %cst_37 : f32 to vector<8x8xf32>
    %265 = arith.addf %264, %263 : vector<8x8xf32>
    %266 = arith.divf %264, %265 : vector<8x8xf32>
    %267 = vector.extract_strided_slice %248 {offsets = [0, 16], sizes = [8, 8], strides = [1, 1]} : vector<8x24xf32> to vector<8x8xf32>
    %268 = vector.extract_strided_slice %250 {offsets = [0, 16], sizes = [8, 8], strides = [1, 1]} : vector<8x24xf32> to vector<8x8xf32>
    %269 = vector.broadcast %6 : vector<1x8xf32> to vector<8x8xf32>
    %270 = arith.addf %268, %269 : vector<8x8xf32>
    %271 = arith.mulf %258, %270 : vector<8x8xf32>
    %272 = arith.addf %267, %271 : vector<8x8xf32>
    %273 = math.tanh %272 : vector<8x8xf32>
    %cst_38 = arith.constant 1.000000e+00 : f32
    %274 = vector.broadcast %cst_38 : f32 to vector<8x8xf32>
    %275 = arith.subf %274, %266 : vector<8x8xf32>
    %276 = arith.mulf %275, %273 : vector<8x8xf32>
    %277 = arith.mulf %266, %243 : vector<8x8xf32>
    %278 = arith.addf %276, %277 : vector<8x8xf32>
    %279 = vector.extract_strided_slice %7 {offsets = [6, 0], sizes = [1, 8], strides = [1, 1]} : vector<9x8xf32> to vector<1x8xf32>
    %280 = vector.broadcast %279 : vector<1x8xf32> to vector<8x8xf32>
    %281 = arith.mulf %278, %280 : vector<8x8xf32>
    %282 = arith.addf %247, %281 : vector<8x8xf32>
    %283 = vector.extract_strided_slice %35 {offsets = [56, 0], sizes = [8, 24], strides = [1, 1]} : vector<64x24xf32> to vector<8x24xf32>
    %284 = arith.truncf %278 : vector<8x8xf32> to vector<8x8xbf16>
    %cst_39 = arith.constant dense<0.000000e+00> : vector<8x24xf32>
    %285 = tpu.matmul %284, %9, %cst_39 {dimension_numbers = #tpu.dot_dimension_numbers<[1], [0], [0], [1], [0, 0, 1, 1], [], []>} : vector<8x8xbf16>, vector<8x24xbf16>, vector<8x24xf32> -> vector<8x24xf32>
    %286 = vector.extract_strided_slice %283 {offsets = [0, 0], sizes = [8, 8], strides = [1, 1]} : vector<8x24xf32> to vector<8x8xf32>
    %287 = vector.extract_strided_slice %285 {offsets = [0, 0], sizes = [8, 8], strides = [1, 1]} : vector<8x24xf32> to vector<8x8xf32>
    %288 = arith.addf %286, %287 : vector<8x8xf32>
    %289 = arith.negf %288 : vector<8x8xf32>
    %290 = math.exp %289 : vector<8x8xf32>
    %cst_40 = arith.constant 1.000000e+00 : f32
    %291 = vector.broadcast %cst_40 : f32 to vector<8x8xf32>
    %292 = arith.addf %291, %290 : vector<8x8xf32>
    %293 = arith.divf %291, %292 : vector<8x8xf32>
    %294 = vector.extract_strided_slice %283 {offsets = [0, 8], sizes = [8, 8], strides = [1, 1]} : vector<8x24xf32> to vector<8x8xf32>
    %295 = vector.extract_strided_slice %285 {offsets = [0, 8], sizes = [8, 8], strides = [1, 1]} : vector<8x24xf32> to vector<8x8xf32>
    %296 = arith.addf %294, %295 : vector<8x8xf32>
    %297 = arith.negf %296 : vector<8x8xf32>
    %298 = math.exp %297 : vector<8x8xf32>
    %cst_41 = arith.constant 1.000000e+00 : f32
    %299 = vector.broadcast %cst_41 : f32 to vector<8x8xf32>
    %300 = arith.addf %299, %298 : vector<8x8xf32>
    %301 = arith.divf %299, %300 : vector<8x8xf32>
    %302 = vector.extract_strided_slice %283 {offsets = [0, 16], sizes = [8, 8], strides = [1, 1]} : vector<8x24xf32> to vector<8x8xf32>
    %303 = vector.extract_strided_slice %285 {offsets = [0, 16], sizes = [8, 8], strides = [1, 1]} : vector<8x24xf32> to vector<8x8xf32>
    %304 = vector.broadcast %6 : vector<1x8xf32> to vector<8x8xf32>
    %305 = arith.addf %303, %304 : vector<8x8xf32>
    %306 = arith.mulf %293, %305 : vector<8x8xf32>
    %307 = arith.addf %302, %306 : vector<8x8xf32>
    %308 = math.tanh %307 : vector<8x8xf32>
    %cst_42 = arith.constant 1.000000e+00 : f32
    %309 = vector.broadcast %cst_42 : f32 to vector<8x8xf32>
    %310 = arith.subf %309, %301 : vector<8x8xf32>
    %311 = arith.mulf %310, %308 : vector<8x8xf32>
    %312 = arith.mulf %301, %278 : vector<8x8xf32>
    %313 = arith.addf %311, %312 : vector<8x8xf32>
    %314 = vector.extract_strided_slice %7 {offsets = [7, 0], sizes = [1, 8], strides = [1, 1]} : vector<9x8xf32> to vector<1x8xf32>
    %315 = vector.broadcast %314 : vector<1x8xf32> to vector<8x8xf32>
    %316 = arith.mulf %313, %315 : vector<8x8xf32>
    %317 = arith.addf %282, %316 : vector<8x8xf32>
    %318 = arith.addf %24, %317 : vector<8x8xf32>
    %319 = vector.extract_strided_slice %7 {offsets = [8, 0], sizes = [1, 8], strides = [1, 1]} : vector<9x8xf32> to vector<1x8xf32>
    %320 = vector.broadcast %319 : vector<1x8xf32> to vector<8x8xf32>
    %321 = arith.addf %318, %320 : vector<8x8xf32>
    %322 = tpu.concatenate %11, %321 in 1 : vector<8x8xf32>, vector<8x8xf32> -> vector<8x16xf32>
    %c0_43 = arith.constant 0 : index
    %c0_44 = arith.constant 0 : index
    %323 = vector.load %arg5[%c0_43, %c0_44] : memref<8x16xf32, #tpu.memory_space<vmem>>, vector<8x16xf32>
    tpu.vector_store %arg5[%c0_43, %c0_44], %322 {strides = array<i32>} : memref<8x16xf32, #tpu.memory_space<vmem>>, vector<8x16xf32>,
    return
  }
  func.func @transform_0(%arg0: i32) -> (i32, i32) {
    %c0_i32 = arith.constant 0 : i32
    %c0_i32_0 = arith.constant 0 : i32
    return %arg0, %c0_i32 : i32, i32
  }
  func.func @transform_1(%arg0: i32) -> (i32, i32) {
    %c0_i32 = arith.constant 0 : i32
    %c0_i32_0 = arith.constant 0 : i32
    return %arg0, %c0_i32 : i32, i32
  }
  func.func @transform_2(%arg0: i32) -> (i32, i32) {
    %c0_i32 = arith.constant 0 : i32
    %c0_i32_0 = arith.constant 0 : i32
    %c0_i32_1 = arith.constant 0 : i32
    return %c0_i32, %c0_i32_0 : i32, i32
  }
  func.func @transform_3(%arg0: i32) -> (i32, i32) {
    %c0_i32 = arith.constant 0 : i32
    %c0_i32_0 = arith.constant 0 : i32
    %c0_i32_1 = arith.constant 0 : i32
    return %c0_i32, %c0_i32_0 : i32, i32
  }
  func.func @transform_4(%arg0: i32) -> (i32, i32) {
    %c0_i32 = arith.constant 0 : i32
    %c0_i32_0 = arith.constant 0 : i32
    return %arg0, %c0_i32 : i32, i32
  }
}

</mosaic_0001>

<llo_original>
// kernel: temporal_realnvp_flow.1
$region0: #{temporal_realnvp_flow.1}
  #allocation0 [shape = 'u32[]', space=smem, size = 0x4, offset = 0x4, fixed_abs, tag = 'smem constant byte address 0x4 - core index']
  #allocation1 [shape = 'u32[144,128]{1,0:T(1,128)}', space=vmem, size = 0x12000, scoped, tag = 'internal scratch']
  %s0 = inlined_call_operand.vmem [shape: f32[8,16], index: 0, kind: input, shape index: {}, may-alias: {0,4}]
  %s1 = inlined_call_operand.vmem [shape: f32[64,1], index: 1, kind: input, shape index: {}]
  %s2 = inlined_call_operand.vmem [shape: f32[21,24], index: 2, kind: input, shape index: {}]
  %s3 = inlined_call_operand.vmem [shape: bf16[24,24], index: 3, kind: input, shape index: {}]
  %s4 = inlined_call_operand.vmem [shape: f32[8,16], index: 4, kind: output, shape index: {}, may-alias: {0,4}]
  %s5 = sld [smem:[#allocation0]]
  $region26: #{temporal_realnvp_flow.1} parent=0
    _
  %s7 = ssub.s32 1, %s5
  %s8 = scalar_select 0, %s7, %s5
  // Predicated region
  $region2: #{temporal_realnvp_flow.1} parent=0 // pred_check
    _
  $region3: #{temporal_realnvp_flow.1} parent=0 // pred_check_branch
    %10 = sbr.rel (0) target = $region5
  $region4: #{temporal_realnvp_flow.1} parent=0 // pred_region
    _
  $region5: #{temporal_realnvp_flow.1} parent=0 // pred_fallthru
    _
  // Predicated region
  $region6: #{temporal_realnvp_flow.1} parent=0 // pred_check
    _
  $region7: #{temporal_realnvp_flow.1} parent=0 // pred_check_branch
    %12 = sbr.rel (0) target = $region9
  $region8: #{temporal_realnvp_flow.1} parent=0 // pred_region
    _
  $region9: #{temporal_realnvp_flow.1} parent=0 // pred_fallthru
    _
  // Predicated region
  $region10: #{temporal_realnvp_flow.1} parent=0 // pred_check
    _
  $region11: #{temporal_realnvp_flow.1} parent=0 // pred_check_branch
    %14 = sbr.rel (0) target = $region13
  $region12: #{temporal_realnvp_flow.1} parent=0 // pred_region
    _
  $region13: #{temporal_realnvp_flow.1} parent=0 // pred_fallthru
    _
  // Predicated region
  $region14: #{temporal_realnvp_flow.1} parent=0 // pred_check
    _
  $region15: #{temporal_realnvp_flow.1} parent=0 // pred_check_branch
    %16 = sbr.rel (0) target = $region17
  $region16: #{temporal_realnvp_flow.1} parent=0 // pred_region
    _
  $region17: #{temporal_realnvp_flow.1} parent=0 // pred_fallthru
    _
  %v18 = vld [vmem:[%s2] sm:$0xff]
  %v19 = vld [vmem:[%s2 + $0x8] sm:$0xff]
  %v20 = vld [vmem:[%s2 + $0x10] sm:$0x1f]
  %v21 = vld [vmem:[%s3] sm:$0xf]
  %v22 = vld [vmem:[%s3 + $0x4] sm:$0xf]
  %v23 = vld [vmem:[%s3 + $0x8] sm:$0xf]
  %v24 = vld [vmem:[%s0] sm:$0xff]
  %v25 = vlaneseq
  %v26 = vshrl.u32 %v25, 7
  %v27 = vsub.s32 1, %v26
  %v28 = vrot.slane %v19, %v27
  %vm29 = vcmask 64512
  %v31 = vsel %vm29, %v24, 0
  %33 = vmatprep.subr.mxu0 0.0
  %34 = vmatpush1.msra.mxu0 %v18
  %35 = vmatprep.subr.mxu0 0.0
  %36 = vmatpush1.msra.mxu0 0.0
  %37 = vmatprep.subr.mxu0 0.0
  %38 = vmatpush1.msra.mxu0 0.0
  %39 = vmatprep.subr.mxu0 0.0
  %40 = vmatpush1.msra.mxu0 0.0
  %41 = vmatprep.subr.mxu0 0.0
  %42 = vmatpush1.msra.mxu0 0.0
  %43 = vmatprep.subr.mxu0 0.0
  %44 = vmatpush1.msra.mxu0 0.0
  %45 = vmatprep.subr.mxu0 0.0
  %46 = vmatpush1.msra.mxu0 0.0
  %47 = vmatprep.subr.mxu0 0.0
  %48 = vmatpush1.msra.mxu0 0.0
  %49 = vmatprep.subr.mxu0 0.0
  %50 = vmatpush1.msra.mxu0 0.0
  %51 = vmatprep.subr.mxu0 0.0
  %52 = vmatpush1.msra.mxu0 0.0
  %53 = vmatprep.subr.mxu0 0.0
  %54 = vmatpush1.msra.mxu0 0.0
  %55 = vmatprep.subr.mxu0 0.0
  %56 = vmatpush1.msra.mxu0 0.0
  %57 = vmatprep.subr.mxu0 0.0
  %58 = vmatpush1.msra.mxu0 0.0
  %59 = vmatprep.subr.mxu0 0.0
  %60 = vmatpush1.msra.mxu0 0.0
  %61 = vmatprep.subr.mxu0 0.0
  %62 = vmatpush1.msra.mxu0 0.0
  %63 = vmatprep.subr.mxu0 0.0
  %64 = vmatpush1.msra.mxu0 0.0
  %65 = vmatprep.subr.mxu0 0.0
  %66 = vmatpush1.msra.mxu0 0.0
  %67 = vmatprep.subr.mxu0 0.0
  %68 = vmatpush1.msra.mxu0 0.0
  %69 = vmatprep.subr.mxu0 0.0
  %70 = vmatpush1.msra.mxu0 0.0
  %71 = vmatprep.subr.mxu0 0.0
  %72 = vmatpush1.msra.mxu0 0.0
  %73 = vmatprep.subr.mxu0 0.0
  %74 = vmatpush1.msra.mxu0 0.0
  %75 = vmatprep.subr.mxu0 0.0
  %76 = vmatpush1.msra.mxu0 0.0
  %77 = vmatprep.subr.mxu0 0.0
  %78 = vmatpush1.msra.mxu0 0.0
  %79 = vmatprep.subr.mxu0 0.0
  %80 = vmatpush1.msra.mxu0 0.0
  %81 = vmatprep.subr.mxu0 0.0
  %82 = vmatpush1.msra.mxu0 0.0
  %83 = vmatprep.subr.mxu0 0.0
  %84 = vmatpush1.msra.mxu0 0.0
  %85 = vmatprep.subr.mxu0 0.0
  %86 = vmatpush1.msra.mxu0 0.0
  %87 = vmatprep.subr.mxu0 0.0
  %88 = vmatpush1.msra.mxu0 0.0
  %89 = vmatprep.subr.mxu0 0.0
  %90 = vmatpush1.msra.mxu0 0.0
  %91 = vmatprep.subr.mxu0 0.0
  %92 = vmatpush1.msra.mxu0 0.0
  %93 = vmatprep.subr.mxu0 0.0
  %94 = vmatpush1.msra.mxu0 0.0
  %95 = vmatprep.subr.mxu0 0.0
  %96 = vmatpush1.msra.mxu0 0.0
  %97 = vmatprep.mubr.f32.mxu0 0.0
  %98 = vmatmul.mubr.f32.gmra.mrb[0].mxu0 %v31
  %v99 = vpop.f32.mrb[0].mxu0
  %v100 = vadd.f32 %v28, %v99
  %v101 = vpop.f32.mrb[0].mxu0
  %102 = vdwg.mxu0
  %v103 = vxor.u32 %v100, 2147483648
  %v104 = vmul.f32 %v103, 1.442695
  %v105 = vpow.pop %v104
  %v106 = vadd.f32 %v105, 1.0
  %v107 = vrcp.pop %v106
  %v108 = vmul.f32 1.0, %v107
  %109 = vrot.lane.b32.xlu0 %v24, 120
  %v110 = vpop.permute.xlu0 %109
  %v112 = vmul.f32 %v108, %v110
  %114 = vrot.lane.b32.xlu0 %v100, 120
  %v115 = vpop.permute.xlu0 %114
  %v117 = vadd.f32 %v112, %v115
  %v118 = vld [vmem:[%s1] sm:$0xff]
  %v119 = vld [vmem:[%s1 + $0x8] sm:$0xff]
  %v120 = vld [vmem:[%s1 + $0x10] sm:$0xff]
  %v121 = vld [vmem:[%s1 + $0x18] sm:$0xff]
  %v122 = vld [vmem:[%s1 + $0x20] sm:$0xff]
  %v123 = vld [vmem:[%s1 + $0x28] sm:$0xff]
  %v124 = vld [vmem:[%s1 + $0x30] sm:$0xff]
  %v125 = vld [vmem:[%s1 + $0x38] sm:$0xff]
  %127 = vset.pattern.permute.xlu0 0
  %128 = vperm.xlu0 %127, %v118
  %v129 = vpop.permute.xlu0 %128
  %132 = vset.pattern.permute.xlu0 0
  %133 = vperm.xlu0 %132, %v119
  %v134 = vpop.permute.xlu0 %133
  %137 = vset.pattern.permute.xlu0 0
  %138 = vperm.xlu0 %137, %v120
  %v139 = vpop.permute.xlu0 %138
  %142 = vset.pattern.permute.xlu0 0
  %143 = vperm.xlu0 %142, %v121
  %v144 = vpop.permute.xlu0 %143
  %147 = vset.pattern.permute.xlu0 0
  %148 = vperm.xlu0 %147, %v122
  %v149 = vpop.permute.xlu0 %148
  %152 = vset.pattern.permute.xlu0 0
  %153 = vperm.xlu0 %152, %v123
  %v154 = vpop.permute.xlu0 %153
  %157 = vset.pattern.permute.xlu0 0
  %158 = vperm.xlu0 %157, %v124
  %v159 = vpop.permute.xlu0 %158
  %162 = vset.pattern.permute.xlu0 0
  %163 = vperm.xlu0 %162, %v125
  %v164 = vpop.permute.xlu0 %163
  %v166 = vlaneseq
  %v167 = vshrl.u32 %v166, 7
  %v168 = vsub.s32 0, %v167
  %v169 = vrot.slane %v19, %v168
  %v170 = vmul.f32 %v129, %v169
  %v171 = vmul.f32 %v134, %v169
  %v172 = vmul.f32 %v139, %v169
  %v173 = vmul.f32 %v144, %v169
  %v174 = vmul.f32 %v149, %v169
  %v175 = vmul.f32 %v154, %v169
  %v176 = vmul.f32 %v159, %v169
  %v177 = vmul.f32 %v164, %v169
  %v178 = vand.u32 2147483647, %v170
  %vm179 = vcmp.le.f32.partialorder %v178, 0.7853982
  %vm180 = vcmp.lt.s32.totalorder %v170, 0
  %v181 = vand.u32 %v170, 2139095040
  %v182 = vshrl.u32 %v181, 23
  %v183 = vsub.s32 %v182, 127
  %v184 = vand.u32 2147483647, %v170
  %v185 = vand.u32 %v184, 8388607
  %v186 = vor.u32 %v185, 8388608
  %v187 = vsub.s32 0, %v186
  %v188 = vadd.s32 %v183, 1
  %vm189 = vcmp.gt.s32.totalorder %v188, 0
  %v190 = vsel %vm189, %v188, 0
  %v191 = vshrl.u32 %v190, 5
  %v192 = vand.u32 %v190, 31
  %v193 = vsub.s32 32, %v192
  %v194 = vshrl.u32 683565275, %v193
  %v195 = vshll.u32 683565275, %v192
  %v196 = vshrl.u32 2475754826, %v193
  %v197 = vor.u32 %v195, %v196
  %v198 = vshll.u32 2475754826, %v192
  %v199 = vshrl.u32 2131351028, %v193
  %v200 = vor.u32 %v198, %v199
  %v201 = vshll.u32 2131351028, %v192
  %v202 = vshrl.u32 2102212464, %v193
  %v203 = vor.u32 %v201, %v202
  %v204 = vshll.u32 2102212464, %v192
  %v205 = vshrl.u32 920167782, %v193
  %v206 = vor.u32 %v204, %v205
  %v207 = vshll.u32 920167782, %v192
  %v208 = vshrl.u32 1326507024, %v193
  %v209 = vor.u32 %v207, %v208
  %vm210 = vcmp.lt.s32.totalorder %v191, 1
  %vm211 = vcmp.lt.s32.totalorder %v191, 2
  %vm212 = vcmp.lt.s32.totalorder %v191, 3
  %vm213 = vcmp.lt.s32.totalorder %v191, 4
  %v214 = vsel %vm210, %v194, %v197
  %v215 = vsel %vm213, %v203, 2102212464
  %v216 = vsel %vm212, %v200, %v215
  %v217 = vsel %vm211, %v214, %v216
  %v218 = vsel %vm210, %v197, %v200
  %v219 = vsel %vm213, %v206, 920167782
  %v220 = vsel %vm212, %v203, %v219
  %v221 = vsel %vm211, %v218, %v220
  %v222 = vsel %vm210, %v200, %v203
  %v223 = vsel %vm213, %v209, 1326507024
  %v224 = vsel %vm212, %v206, %v223
  %v225 = vsel %vm211, %v222, %v224
  %v226 = vshll.u32 %v186, 8
  %v227 = vmul.u32.u64.compose %v226, %v225
  %v228 = vextract.low.u32 %v227
  %v229 = vextract.high.u32 %v227
  %v230 = vmul.u32.u64.compose %v226, %v221
  %v231 = vextract.low.u32 %v230
  %v232 = vextract.high.u32 %v230
  %v233 = vmul.u32 %v226, %v217
  %v234 = vadd.s32 %v229, %v231
  %vm235 = vc.u32 %v229, %v231
  %v236 = vadd.s32 %v232, 1
  %v237 = vsel %vm235, %v236, %v232
  %v238 = vadd.s32 %v233, %v237
  %v239 = vadd.s32 %v238, 536870912
  %v240 = vshrl.u32 %v239, 30
  %v241 = vshll.u32 %v240, 30
  %v242 = vsub.s32 %v238, %v241
  %vm243 = vcmp.lt.s32.totalorder %v242, 0
  %v244 = vsub.s32 0, %v242
  %v245 = vsel %vm243, %v244, %v242
  %v246 = vclz %v245
  %v247 = vsub.s32 %v246, 2
  %vm248 = vcmp.gt.s32.totalorder 0, %v247
  %v249 = vsel %vm248, 0, %v247
  %v250 = vsub.s32 32, %v249
  %v251 = vshll.u32 %v242, %v249
  %v252 = vshrl.u32 %v234, %v250
  %v253 = vor.u32 %v251, %v252
  %v254 = vsub.s32 4294967266, %v249
  %v255 = vadd.s32 %v254, 127
  %v256 = vshll.u32 %v255, 23
  %v257 = vor.u32 4788187, %v256
  %v258 = vand.u32 2147483647, %v257
  %v260 = vcvt.s32.f32 %v253
  %v261 = vmul.f32 %v260, %v258
  %v262 = vxor.u32 %v261, 2147483648
  %v263 = vsel %vm180, %v262, %v261
  %v264 = vsub.s32 4, %v240
  %v265 = vsel %vm180, %v264, %v240
  %v266 = vsel %vm179, %v170, %v263
  %v267 = vsel %vm179, 0, %v265
  %v268 = vcosq.f32.pop %v266
  %v269 = vsinq.f32.pop %v266
  %vm270 = vweird.f32 %v170
  %v271 = vadd.s32 %v267, 3
  %v272 = vand.u32 %v271, 3
  %vm273 = vcmp.lt.s32.totalorder %v272, 2
  %vm274 = vcmp.eq.s32.totalorder %v272, 0
  %v275 = vxor.u32 %v269, 2147483648
  %v276 = vsel %vm274, %v268, %v275
  %vm277 = vcmp.eq.s32.totalorder %v272, 2
  %v278 = vxor.u32 %v268, 2147483648
  %v279 = vsel %vm277, %v278, %v269
  %v280 = vsel %vm273, %v276, %v279
  %v281 = vsel %vm270, nan, %v280
  %v282 = vand.u32 2147483647, %v171
  %vm283 = vcmp.le.f32.partialorder %v282, 0.7853982
  %vm284 = vcmp.lt.s32.totalorder %v171, 0
  %v285 = vand.u32 %v171, 2139095040
  %v286 = vshrl.u32 %v285, 23
  %v287 = vsub.s32 %v286, 127
  %v288 = vand.u32 2147483647, %v171
  %v289 = vand.u32 %v288, 8388607
  %v290 = vor.u32 %v289, 8388608
  %v291 = vsub.s32 0, %v290
  %v292 = vadd.s32 %v287, 1
  %vm293 = vcmp.gt.s32.totalorder %v292, 0
  %v294 = vsel %vm293, %v292, 0
  %v295 = vshrl.u32 %v294, 5
  %v296 = vand.u32 %v294, 31
  %v297 = vsub.s32 32, %v296
  %v298 = vshrl.u32 683565275, %v297
  %v299 = vshll.u32 683565275, %v296
  %v300 = vshrl.u32 2475754826, %v297
  %v301 = vor.u32 %v299, %v300
  %v302 = vshll.u32 2475754826, %v296
  %v303 = vshrl.u32 2131351028, %v297
  %v304 = vor.u32 %v302, %v303
  %v305 = vshll.u32 2131351028, %v296
  %v306 = vshrl.u32 2102212464, %v297
  %v307 = vor.u32 %v305, %v306
  %v308 = vshll.u32 2102212464, %v296
  %v309 = vshrl.u32 920167782, %v297
  %v310 = vor.u32 %v308, %v309
  %v311 = vshll.u32 920167782, %v296
  %v312 = vshrl.u32 1326507024, %v297
  %v313 = vor.u32 %v311, %v312
  %vm314 = vcmp.lt.s32.totalorder %v295, 1
  %vm315 = vcmp.lt.s32.totalorder %v295, 2
  %vm316 = vcmp.lt.s32.totalorder %v295, 3
  %vm317 = vcmp.lt.s32.totalorder %v295, 4
  %v318 = vsel %vm314, %v298, %v301
  %v319 = vsel %vm317, %v307, 2102212464
  %v320 = vsel %vm316, %v304, %v319
  %v321 = vsel %vm315, %v318, %v320
  %v322 = vsel %vm314, %v301, %v304
  %v323 = vsel %vm317, %v310, 920167782
  %v324 = vsel %vm316, %v307, %v323
  %v325 = vsel %vm315, %v322, %v324
  %v326 = vsel %vm314, %v304, %v307
  %v327 = vsel %vm317, %v313, 1326507024
  %v328 = vsel %vm316, %v310, %v327
  %v329 = vsel %vm315, %v326, %v328
  %v330 = vshll.u32 %v290, 8
  %v331 = vmul.u32.u64.compose %v330, %v329
  %v332 = vextract.low.u32 %v331
  %v333 = vextract.high.u32 %v331
  %v334 = vmul.u32.u64.compose %v330, %v325
  %v335 = vextract.low.u32 %v334
  %v336 = vextract.high.u32 %v334
  %v337 = vmul.u32 %v330, %v321
  %v338 = vadd.s32 %v333, %v335
  %vm339 = vc.u32 %v333, %v335
  %v340 = vadd.s32 %v336, 1
  %v341 = vsel %vm339, %v340, %v336
  %v342 = vadd.s32 %v337, %v341
  %v343 = vadd.s32 %v342, 536870912
  %v344 = vshrl.u32 %v343, 30
  %v345 = vshll.u32 %v344, 30
  %v346 = vsub.s32 %v342, %v345
  %vm347 = vcmp.lt.s32.totalorder %v346, 0
  %v348 = vsub.s32 0, %v346
  %v349 = vsel %vm347, %v348, %v346
  %v350 = vclz %v349
  %v351 = vsub.s32 %v350, 2
  %vm352 = vcmp.gt.s32.totalorder 0, %v351
  %v353 = vsel %vm352, 0, %v351
  %v354 = vsub.s32 32, %v353
  %v355 = vshll.u32 %v346, %v353
  %v356 = vshrl.u32 %v338, %v354
  %v357 = vor.u32 %v355, %v356
  %v358 = vsub.s32 4294967266, %v353
  %v359 = vadd.s32 %v358, 127
  %v360 = vshll.u32 %v359, 23
  %v361 = vor.u32 4788187, %v360
  %v362 = vand.u32 2147483647, %v361
  %v364 = vcvt.s32.f32 %v357
  %v365 = vmul.f32 %v364, %v362
  %v366 = vxor.u32 %v365, 2147483648
  %v367 = vsel %vm284, %v366, %v365
  %v368 = vsub.s32 4, %v344
  %v369 = vsel %vm284, %v368, %v344
  %v370 = vsel %vm283, %v171, %v367
  %v371 = vsel %vm283, 0, %v369
  %v372 = vcosq.f32.pop %v370
  %v373 = vsinq.f32.pop %v370
  %vm374 = vweird.f32 %v171
  %v375 = vadd.s32 %v371, 3
  %v376 = vand.u32 %v375, 3
  %vm377 = vcmp.lt.s32.totalorder %v376, 2
  %vm378 = vcmp.eq.s32.totalorder %v376, 0
  %v379 = vxor.u32 %v373, 2147483648
  %v380 = vsel %vm378, %v372, %v379
  %vm381 = vcmp.eq.s32.totalorder %v376, 2
  %v382 = vxor.u32 %v372, 2147483648
  %v383 = vsel %vm381, %v382, %v373
  %v384 = vsel %vm377, %v380, %v383
  %v385 = vsel %vm374, nan, %v384
  %v386 = vand.u32 2147483647, %v172
  %vm387 = vcmp.le.f32.partialorder %v386, 0.7853982
  %vm388 = vcmp.lt.s32.totalorder %v172, 0
  %v389 = vand.u32 %v172, 2139095040
  %v390 = vshrl.u32 %v389, 23
  %v391 = vsub.s32 %v390, 127
  %v392 = vand.u32 2147483647, %v172
  %v393 = vand.u32 %v392, 8388607
  %v394 = vor.u32 %v393, 8388608
  %v395 = vsub.s32 0, %v394
  %v396 = vadd.s32 %v391, 1
  %vm397 = vcmp.gt.s32.totalorder %v396, 0
  %v398 = vsel %vm397, %v396, 0
  %v399 = vshrl.u32 %v398, 5
  %v400 = vand.u32 %v398, 31
  %v401 = vsub.s32 32, %v400
  %v402 = vshrl.u32 683565275, %v401
  %v403 = vshll.u32 683565275, %v400
  %v404 = vshrl.u32 2475754826, %v401
  %v405 = vor.u32 %v403, %v404
  %v406 = vshll.u32 2475754826, %v400
  %v407 = vshrl.u32 2131351028, %v401
  %v408 = vor.u32 %v406, %v407
  %v409 = vshll.u32 2131351028, %v400
  %v410 = vshrl.u32 2102212464, %v401
  %v411 = vor.u32 %v409, %v410
  %v412 = vshll.u32 2102212464, %v400
  %v413 = vshrl.u32 920167782, %v401
  %v414 = vor.u32 %v412, %v413
  %v415 = vshll.u32 920167782, %v400
  %v416 = vshrl.u32 1326507024, %v401
  %v417 = vor.u32 %v415, %v416
  %vm418 = vcmp.lt.s32.totalorder %v399, 1
  %vm419 = vcmp.lt.s32.totalorder %v399, 2
  %vm420 = vcmp.lt.s32.totalorder %v399, 3
  %vm421 = vcmp.lt.s32.totalorder %v399, 4
  %v422 = vsel %vm418, %v402, %v405
  %v423 = vsel %vm421, %v411, 2102212464
  %v424 = vsel %vm420, %v408, %v423
  %v425 = vsel %vm419, %v422, %v424
  %v426 = vsel %vm418, %v405, %v408
  %v427 = vsel %vm421, %v414, 920167782
  %v428 = vsel %vm420, %v411, %v427
  %v429 = vsel %vm419, %v426, %v428
  %v430 = vsel %vm418, %v408, %v411
  %v431 = vsel %vm421, %v417, 1326507024
  %v432 = vsel %vm420, %v414, %v431
  %v433 = vsel %vm419, %v430, %v432
  %v434 = vshll.u32 %v394, 8
  %v435 = vmul.u32.u64.compose %v434, %v433
  %v436 = vextract.low.u32 %v435
  %v437 = vextract.high.u32 %v435
  %v438 = vmul.u32.u64.compose %v434, %v429
  %v439 = vextract.low.u32 %v438
  %v440 = vextract.high.u32 %v438
  %v441 = vmul.u32 %v434, %v425
  %v442 = vadd.s32 %v437, %v439
  %vm443 = vc.u32 %v437, %v439
  %v444 = vadd.s32 %v440, 1
  %v445 = vsel %vm443, %v444, %v440
  %v446 = vadd.s32 %v441, %v445
  %v447 = vadd.s32 %v446, 536870912
  %v448 = vshrl.u32 %v447, 30
  %v449 = vshll.u32 %v448, 30
  %v450 = vsub.s32 %v446, %v449
  %vm451 = vcmp.lt.s32.totalorder %v450, 0
  %v452 = vsub.s32 0, %v450
  %v453 = vsel %vm451, %v452, %v450
  %v454 = vclz %v453
  %v455 = vsub.s32 %v454, 2
  %vm456 = vcmp.gt.s32.totalorder 0, %v455
  %v457 = vsel %vm456, 0, %v455
  %v458 = vsub.s32 32, %v457
  %v459 = vshll.u32 %v450, %v457
  %v460 = vshrl.u32 %v442, %v458
  %v461 = vor.u32 %v459, %v460
  %v462 = vsub.s32 4294967266, %v457
  %v463 = vadd.s32 %v462, 127
  %v464 = vshll.u32 %v463, 23
  %v465 = vor.u32 4788187, %v464
  %v466 = vand.u32 2147483647, %v465
  %v468 = vcvt.s32.f32 %v461
  %v469 = vmul.f32 %v468, %v466
  %v470 = vxor.u32 %v469, 2147483648
  %v471 = vsel %vm388, %v470, %v469
  %v472 = vsub.s32 4, %v448
  %v473 = vsel %vm388, %v472, %v448
  %v474 = vsel %vm387, %v172, %v471
  %v475 = vsel %vm387, 0, %v473
  %v476 = vcosq.f32.pop %v474
  %v477 = vsinq.f32.pop %v474
  %vm478 = vweird.f32 %v172
  %v479 = vadd.s32 %v475, 3
  %v480 = vand.u32 %v479, 3
  %vm481 = vcmp.lt.s32.totalorder %v480, 2
  %vm482 = vcmp.eq.s32.totalorder %v480, 0
  %v483 = vxor.u32 %v477, 2147483648
  %v484 = vsel %vm482, %v476, %v483
  %vm485 = vcmp.eq.s32.totalorder %v480, 2
  %v486 = vxor.u32 %v476, 2147483648
  %v487 = vsel %vm485, %v486, %v477
  %v488 = vsel %vm481, %v484, %v487
  %v489 = vsel %vm478, nan, %v488
  %v490 = vand.u32 2147483647, %v173
  %vm491 = vcmp.le.f32.partialorder %v490, 0.7853982
  %vm492 = vcmp.lt.s32.totalorder %v173, 0
  %v493 = vand.u32 %v173, 2139095040
  %v494 = vshrl.u32 %v493, 23
  %v495 = vsub.s32 %v494, 127
  %v496 = vand.u32 2147483647, %v173
  %v497 = vand.u32 %v496, 8388607
  %v498 = vor.u32 %v497, 8388608
  %v499 = vsub.s32 0, %v498
  %v500 = vadd.s32 %v495, 1
  %vm501 = vcmp.gt.s32.totalorder %v500, 0
  %v502 = vsel %vm501, %v500, 0
  %v503 = vshrl.u32 %v502, 5
  %v504 = vand.u32 %v502, 31
  %v505 = vsub.s32 32, %v504
  %v506 = vshrl.u32 683565275, %v505
  %v507 = vshll.u32 683565275, %v504
  %v508 = vshrl.u32 2475754826, %v505
  %v509 = vor.u32 %v507, %v508
  %v510 = vshll.u32 2475754826, %v504
  %v511 = vshrl.u32 2131351028, %v505
  %v512 = vor.u32 %v510, %v511
  %v513 = vshll.u32 2131351028, %v504
  %v514 = vshrl.u32 2102212464, %v505
  %v515 = vor.u32 %v513, %v514
  %v516 = vshll.u32 2102212464, %v504
  %v517 = vshrl.u32 920167782, %v505
  %v518 = vor.u32 %v516, %v517
  %v519 = vshll.u32 920167782, %v504
  %v520 = vshrl.u32 1326507024, %v505
  %v521 = vor.u32 %v519, %v520
  %vm522 = vcmp.lt.s32.totalorder %v503, 1
  %vm523 = vcmp.lt.s32.totalorder %v503, 2
  %vm524 = vcmp.lt.s32.totalorder %v503, 3
  %vm525 = vcmp.lt.s32.totalorder %v503, 4
  %v526 = vsel %vm522, %v506, %v509
  %v527 = vsel %vm525, %v515, 2102212464
  %v528 = vsel %vm524, %v512, %v527
  %v529 = vsel %vm523, %v526, %v528
  %v530 = vsel %vm522, %v509, %v512
  %v531 = vsel %vm525, %v518, 920167782
  %v532 = vsel %vm524, %v515, %v531
  %v533 = vsel %vm523, %v530, %v532
  %v534 = vsel %vm522, %v512, %v515
  %v535 = vsel %vm525, %v521, 1326507024
  %v536 = vsel %vm524, %v518, %v535
  %v537 = vsel %vm523, %v534, %v536
  %v538 = vshll.u32 %v498, 8
  %v539 = vmul.u32.u64.compose %v538, %v537
  %v540 = vextract.low.u32 %v539
  %v541 = vextract.high.u32 %v539
  %v542 = vmul.u32.u64.compose %v538, %v533
  %v543 = vextract.low.u32 %v542
  %v544 = vextract.high.u32 %v542
  %v545 = vmul.u32 %v538, %v529
  %v546 = vadd.s32 %v541, %v543
  %vm547 = vc.u32 %v541, %v543
  %v548 = vadd.s32 %v544, 1
  %v549 = vsel %vm547, %v548, %v544
  %v550 = vadd.s32 %v545, %v549
  %v551 = vadd.s32 %v550, 536870912
  %v552 = vshrl.u32 %v551, 30
  %v553 = vshll.u32 %v552, 30
  %v554 = vsub.s32 %v550, %v553
  %vm555 = vcmp.lt.s32.totalorder %v554, 0
  %v556 = vsub.s32 0, %v554
  %v557 = vsel %vm555, %v556, %v554
  %v558 = vclz %v557
  %v559 = vsub.s32 %v558, 2
  %vm560 = vcmp.gt.s32.totalorder 0, %v559
  %v561 = vsel %vm560, 0, %v559
  %v562 = vsub.s32 32, %v561
  %v563 = vshll.u32 %v554, %v561
  %v564 = vshrl.u32 %v546, %v562
  %v565 = vor.u32 %v563, %v564
  %v566 = vsub.s32 4294967266, %v561
  %v567 = vadd.s32 %v566, 127
  %v568 = vshll.u32 %v567, 23
  %v569 = vor.u32 4788187, %v568
  %v570 = vand.u32 2147483647, %v569
  %v572 = vcvt.s32.f32 %v565
  %v573 = vmul.f32 %v572, %v570
  %v574 = vxor.u32 %v573, 2147483648
  %v575 = vsel %vm492, %v574, %v573
  %v576 = vsub.s32 4, %v552
  %v577 = vsel %vm492, %v576, %v552
  %v578 = vsel %vm491, %v173, %v575
  %v579 = vsel %vm491, 0, %v577
  %v580 = vcosq.f32.pop %v578
  %v581 = vsinq.f32.pop %v578
  %vm582 = vweird.f32 %v173
  %v583 = vadd.s32 %v579, 3
  %v584 = vand.u32 %v583, 3
  %vm585 = vcmp.lt.s32.totalorder %v584, 2
  %vm586 = vcmp.eq.s32.totalorder %v584, 0
  %v587 = vxor.u32 %v581, 2147483648
  %v588 = vsel %vm586, %v580, %v587
  %vm589 = vcmp.eq.s32.totalorder %v584, 2
  %v590 = vxor.u32 %v580, 2147483648
  %v591 = vsel %vm589, %v590, %v581
  %v592 = vsel %vm585, %v588, %v591
  %v593 = vsel %vm582, nan, %v592
  %v594 = vand.u32 2147483647, %v174
  %vm595 = vcmp.le.f32.partialorder %v594, 0.7853982
  %vm596 = vcmp.lt.s32.totalorder %v174, 0
  %v597 = vand.u32 %v174, 2139095040
  %v598 = vshrl.u32 %v597, 23
  %v599 = vsub.s32 %v598, 127
  %v600 = vand.u32 2147483647, %v174
  %v601 = vand.u32 %v600, 8388607
  %v602 = vor.u32 %v601, 8388608
  %v603 = vsub.s32 0, %v602
  %v604 = vadd.s32 %v599, 1
  %vm605 = vcmp.gt.s32.totalorder %v604, 0
  %v606 = vsel %vm605, %v604, 0
  %v607 = vshrl.u32 %v606, 5
  %v608 = vand.u32 %v606, 31
  %v609 = vsub.s32 32, %v608
  %v610 = vshrl.u32 683565275, %v609
  %v611 = vshll.u32 683565275, %v608
  %v612 = vshrl.u32 2475754826, %v609
  %v613 = vor.u32 %v611, %v612
  %v614 = vshll.u32 2475754826, %v608
  %v615 = vshrl.u32 2131351028, %v609
  %v616 = vor.u32 %v614, %v615
  %v617 = vshll.u32 2131351028, %v608
  %v618 = vshrl.u32 2102212464, %v609
  %v619 = vor.u32 %v617, %v618
  %v620 = vshll.u32 2102212464, %v608
  %v621 = vshrl.u32 920167782, %v609
  %v622 = vor.u32 %v620, %v621
  %v623 = vshll.u32 920167782, %v608
  %v624 = vshrl.u32 1326507024, %v609
  %v625 = vor.u32 %v623, %v624
  %vm626 = vcmp.lt.s32.totalorder %v607, 1
  %vm627 = vcmp.lt.s32.totalorder %v607, 2
  %vm628 = vcmp.lt.s32.totalorder %v607, 3
  %vm629 = vcmp.lt.s32.totalorder %v607, 4
  %v630 = vsel %vm626, %v610, %v613
  %v631 = vsel %vm629, %v619, 2102212464
  %v632 = vsel %vm628, %v616, %v631
  %v633 = vsel %vm627, %v630, %v632
  %v634 = vsel %vm626, %v613, %v616
  %v635 = vsel %vm629, %v622, 920167782
  %v636 = vsel %vm628, %v619, %v635
  %v637 = vsel %vm627, %v634, %v636
  %v638 = vsel %vm626, %v616, %v619
  %v639 = vsel %vm629, %v625, 1326507024
  %v640 = vsel %vm628, %v622, %v639
  %v641 = vsel %vm627, %v638, %v640
  %v642 = vshll.u32 %v602, 8
  %v643 = vmul.u32.u64.compose %v642, %v641
  %v644 = vextract.low.u32 %v643
  %v645 = vextract.high.u32 %v643
  %v646 = vmul.u32.u64.compose %v642, %v637
  %v647 = vextract.low.u32 %v646
  %v648 = vextract.high.u32 %v646
  %v649 = vmul.u32 %v642, %v633
  %v650 = vadd.s32 %v645, %v647
  %vm651 = vc.u32 %v645, %v647
  %v652 = vadd.s32 %v648, 1
  %v653 = vsel %vm651, %v652, %v648
  %v654 = vadd.s32 %v649, %v653
  %v655 = vadd.s32 %v654, 536870912
  %v656 = vshrl.u32 %v655, 30
  %v657 = vshll.u32 %v656, 30
  %v658 = vsub.s32 %v654, %v657
  %vm659 = vcmp.lt.s32.totalorder %v658, 0
  %v660 = vsub.s32 0, %v658
  %v661 = vsel %vm659, %v660, %v658
  %v662 = vclz %v661
  %v663 = vsub.s32 %v662, 2
  %vm664 = vcmp.gt.s32.totalorder 0, %v663
  %v665 = vsel %vm664, 0, %v663
  %v666 = vsub.s32 32, %v665
  %v667 = vshll.u32 %v658, %v665
  %v668 = vshrl.u32 %v650, %v666
  %v669 = vor.u32 %v667, %v668
  %v670 = vsub.s32 4294967266, %v665
  %v671 = vadd.s32 %v670, 127
  %v672 = vshll.u32 %v671, 23
  %v673 = vor.u32 4788187, %v672
  %v674 = vand.u32 2147483647, %v673
  %v676 = vcvt.s32.f32 %v669
  %v677 = vmul.f32 %v676, %v674
  %v678 = vxor.u32 %v677, 2147483648
  %v679 = vsel %vm596, %v678, %v677
  %v680 = vsub.s32 4, %v656
  %v681 = vsel %vm596, %v680, %v656
  %v682 = vsel %vm595, %v174, %v679
  %v683 = vsel %vm595, 0, %v681
  %v684 = vcosq.f32.pop %v682
  %v685 = vsinq.f32.pop %v682
  %vm686 = vweird.f32 %v174
  %v687 = vadd.s32 %v683, 3
  %v688 = vand.u32 %v687, 3
  %vm689 = vcmp.lt.s32.totalorder %v688, 2
  %vm690 = vcmp.eq.s32.totalorder %v688, 0
  %v691 = vxor.u32 %v685, 2147483648
  %v692 = vsel %vm690, %v684, %v691
  %vm693 = vcmp.eq.s32.totalorder %v688, 2
  %v694 = vxor.u32 %v684, 2147483648
  %v695 = vsel %vm693, %v694, %v685
  %v696 = vsel %vm689, %v692, %v695
  %v697 = vsel %vm686, nan, %v696
  %v698 = vand.u32 2147483647, %v175
  %vm699 = vcmp.le.f32.partialorder %v698, 0.7853982
  %vm700 = vcmp.lt.s32.totalorder %v175, 0
  %v701 = vand.u32 %v175, 2139095040
  %v702 = vshrl.u32 %v701, 23
  %v703 = vsub.s32 %v702, 127
  %v704 = vand.u32 2147483647, %v175
  %v705 = vand.u32 %v704, 8388607
  %v706 = vor.u32 %v705, 8388608
  %v707 = vsub.s32 0, %v706
  %v708 = vadd.s32 %v703, 1
  %vm709 = vcmp.gt.s32.totalorder %v708, 0
  %v710 = vsel %vm709, %v708, 0
  %v711 = vshrl.u32 %v710, 5
  %v712 = vand.u32 %v710, 31
  %v713 = vsub.s32 32, %v712
  %v714 = vshrl.u32 683565275, %v713
  %v715 = vshll.u32 683565275, %v712
  %v716 = vshrl.u32 2475754826, %v713
  %v717 = vor.u32 %v715, %v716
  %v718 = vshll.u32 2475754826, %v712
  %v719 = vshrl.u32 2131351028, %v713
  %v720 = vor.u32 %v718, %v719
  %v721 = vshll.u32 2131351028, %v712
  %v722 = vshrl.u32 2102212464, %v713
  %v723 = vor.u32 %v721, %v722
  %v724 = vshll.u32 2102212464, %v712
  %v725 = vshrl.u32 920167782, %v713
  %v726 = vor.u32 %v724, %v725
  %v727 = vshll.u32 920167782, %v712
  %v728 = vshrl.u32 1326507024, %v713
  %v729 = vor.u32 %v727, %v728
  %vm730 = vcmp.lt.s32.totalorder %v711, 1
  %vm731 = vcmp.lt.s32.totalorder %v711, 2
  %vm732 = vcmp.lt.s32.totalorder %v711, 3
  %vm733 = vcmp.lt.s32.totalorder %v711, 4
  %v734 = vsel %vm730, %v714, %v717
  %v735 = vsel %vm733, %v723, 2102212464
  %v736 = vsel %vm732, %v720, %v735
  %v737 = vsel %vm731, %v734, %v736
  %v738 = vsel %vm730, %v717, %v720
  %v739 = vsel %vm733, %v726, 920167782
  %v740 = vsel %vm732, %v723, %v739
  %v741 = vsel %vm731, %v738, %v740
  %v742 = vsel %vm730, %v720, %v723
  %v743 = vsel %vm733, %v729, 1326507024
  %v744 = vsel %vm732, %v726, %v743
  %v745 = vsel %vm731, %v742, %v744
  %v746 = vshll.u32 %v706, 8
  %v747 = vmul.u32.u64.compose %v746, %v745
  %v748 = vextract.low.u32 %v747
  %v749 = vextract.high.u32 %v747
  %v750 = vmul.u32.u64.compose %v746, %v741
  %v751 = vextract.low.u32 %v750
  %v752 = vextract.high.u32 %v750
  %v753 = vmul.u32 %v746, %v737
  %v754 = vadd.s32 %v749, %v751
  %vm755 = vc.u32 %v749, %v751
  %v756 = vadd.s32 %v752, 1
  %v757 = vsel %vm755, %v756, %v752
  %v758 = vadd.s32 %v753, %v757
  %v759 = vadd.s32 %v758, 536870912
  %v760 = vshrl.u32 %v759, 30
  %v761 = vshll.u32 %v760, 30
  %v762 = vsub.s32 %v758, %v761
  %vm763 = vcmp.lt.s32.totalorder %v762, 0
  %v764 = vsub.s32 0, %v762
  %v765 = vsel %vm763, %v764, %v762
  %v766 = vclz %v765
  %v767 = vsub.s32 %v766, 2
  %vm768 = vcmp.gt.s32.totalorder 0, %v767
  %v769 = vsel %vm768, 0, %v767
  %v770 = vsub.s32 32, %v769
  %v771 = vshll.u32 %v762, %v769
  %v772 = vshrl.u32 %v754, %v770
  %v773 = vor.u32 %v771, %v772
  %v774 = vsub.s32 4294967266, %v769
  %v775 = vadd.s32 %v774, 127
  %v776 = vshll.u32 %v775, 23
  %v777 = vor.u32 4788187, %v776
  %v778 = vand.u32 2147483647, %v777
  %v780 = vcvt.s32.f32 %v773
  %v781 = vmul.f32 %v780, %v778
  %v782 = vxor.u32 %v781, 2147483648
  %v783 = vsel %vm700, %v782, %v781
  %v784 = vsub.s32 4, %v760
  %v785 = vsel %vm700, %v784, %v760
  %v786 = vsel %vm699, %v175, %v783
  %v787 = vsel %vm699, 0, %v785
  %v788 = vcosq.f32.pop %v786
  %v789 = vsinq.f32.pop %v786
  %vm790 = vweird.f32 %v175
  %v791 = vadd.s32 %v787, 3
  %v792 = vand.u32 %v791, 3
  %vm793 = vcmp.lt.s32.totalorder %v792, 2
  %vm794 = vcmp.eq.s32.totalorder %v792, 0
  %v795 = vxor.u32 %v789, 2147483648
  %v796 = vsel %vm794, %v788, %v795
  %vm797 = vcmp.eq.s32.totalorder %v792, 2
  %v798 = vxor.u32 %v788, 2147483648
  %v799 = vsel %vm797, %v798, %v789
  %v800 = vsel %vm793, %v796, %v799
  %v801 = vsel %vm790, nan, %v800
  %v802 = vand.u32 2147483647, %v176
  %vm803 = vcmp.le.f32.partialorder %v802, 0.7853982
  %vm804 = vcmp.lt.s32.totalorder %v176, 0
  %v805 = vand.u32 %v176, 2139095040
  %v806 = vshrl.u32 %v805, 23
  %v807 = vsub.s32 %v806, 127
  %v808 = vand.u32 2147483647, %v176
  %v809 = vand.u32 %v808, 8388607
  %v810 = vor.u32 %v809, 8388608
  %v811 = vsub.s32 0, %v810
  %v812 = vadd.s32 %v807, 1
  %vm813 = vcmp.gt.s32.totalorder %v812, 0
  %v814 = vsel %vm813, %v812, 0
  %v815 = vshrl.u32 %v814, 5
  %v816 = vand.u32 %v814, 31
  %v817 = vsub.s32 32, %v816
  %v818 = vshrl.u32 683565275, %v817
  %v819 = vshll.u32 683565275, %v816
  %v820 = vshrl.u32 2475754826, %v817
  %v821 = vor.u32 %v819, %v820
  %v822 = vshll.u32 2475754826, %v816
  %v823 = vshrl.u32 2131351028, %v817
  %v824 = vor.u32 %v822, %v823
  %v825 = vshll.u32 2131351028, %v816
  %v826 = vshrl.u32 2102212464, %v817
  %v827 = vor.u32 %v825, %v826
  %v828 = vshll.u32 2102212464, %v816
  %v829 = vshrl.u32 920167782, %v817
  %v830 = vor.u32 %v828, %v829
  %v831 = vshll.u32 920167782, %v816
  %v832 = vshrl.u32 1326507024, %v817
  %v833 = vor.u32 %v831, %v832
  %vm834 = vcmp.lt.s32.totalorder %v815, 1
  %vm835 = vcmp.lt.s32.totalorder %v815, 2
  %vm836 = vcmp.lt.s32.totalorder %v815, 3
  %vm837 = vcmp.lt.s32.totalorder %v815, 4
  %v838 = vsel %vm834, %v818, %v821
  %v839 = vsel %vm837, %v827, 2102212464
  %v840 = vsel %vm836, %v824, %v839
  %v841 = vsel %vm835, %v838, %v840
  %v842 = vsel %vm834, %v821, %v824
  %v843 = vsel %vm837, %v830, 920167782
  %v844 = vsel %vm836, %v827, %v843
  %v845 = vsel %vm835, %v842, %v844
  %v846 = vsel %vm834, %v824, %v827
  %v847 = vsel %vm837, %v833, 1326507024
  %v848 = vsel %vm836, %v830, %v847
  %v849 = vsel %vm835, %v846, %v848
  %v850 = vshll.u32 %v810, 8
  %v851 = vmul.u32.u64.compose %v850, %v849
  %v852 = vextract.low.u32 %v851
  %v853 = vextract.high.u32 %v851
  %v854 = vmul.u32.u64.compose %v850, %v845
  %v855 = vextract.low.u32 %v854
  %v856 = vextract.high.u32 %v854
  %v857 = vmul.u32 %v850, %v841
  %v858 = vadd.s32 %v853, %v855
  %vm859 = vc.u32 %v853, %v855
  %v860 = vadd.s32 %v856, 1
  %v861 = vsel %vm859, %v860, %v856
  %v862 = vadd.s32 %v857, %v861
  %v863 = vadd.s32 %v862, 536870912
  %v864 = vshrl.u32 %v863, 30
  %v865 = vshll.u32 %v864, 30
  %v866 = vsub.s32 %v862, %v865
  %vm867 = vcmp.lt.s32.totalorder %v866, 0
  %v868 = vsub.s32 0, %v866
  %v869 = vsel %vm867, %v868, %v866
  %v870 = vclz %v869
  %v871 = vsub.s32 %v870, 2
  %vm872 = vcmp.gt.s32.totalorder 0, %v871
  %v873 = vsel %vm872, 0, %v871
  %v874 = vsub.s32 32, %v873
  %v875 = vshll.u32 %v866, %v873
  %v876 = vshrl.u32 %v858, %v874
  %v877 = vor.u32 %v875, %v876
  %v878 = vsub.s32 4294967266, %v873
  %v879 = vadd.s32 %v878, 127
  %v880 = vshll.u32 %v879, 23
  %v881 = vor.u32 4788187, %v880
  %v882 = vand.u32 2147483647, %v881
  %v884 = vcvt.s32.f32 %v877
  %v885 = vmul.f32 %v884, %v882
  %v886 = vxor.u32 %v885, 2147483648
  %v887 = vsel %vm804, %v886, %v885
  %v888 = vsub.s32 4, %v864
  %v889 = vsel %vm804, %v888, %v864
  %v890 = vsel %vm803, %v176, %v887
  %v891 = vsel %vm803, 0, %v889
  %v892 = vcosq.f32.pop %v890
  %v893 = vsinq.f32.pop %v890
  %vm894 = vweird.f32 %v176
  %v895 = vadd.s32 %v891, 3
  %v896 = vand.u32 %v895, 3
  %vm897 = vcmp.lt.s32.totalorder %v896, 2
  %vm898 = vcmp.eq.s32.totalorder %v896, 0
  %v899 = vxor.u32 %v893, 2147483648
  %v900 = vsel %vm898, %v892, %v899
  %vm901 = vcmp.eq.s32.totalorder %v896, 2
  %v902 = vxor.u32 %v892, 2147483648
  %v903 = vsel %vm901, %v902, %v893
  %v904 = vsel %vm897, %v900, %v903
  %v905 = vsel %vm894, nan, %v904
  %v906 = vand.u32 2147483647, %v177
  %vm907 = vcmp.le.f32.partialorder %v906, 0.7853982
  %vm908 = vcmp.lt.s32.totalorder %v177, 0
  %v909 = vand.u32 %v177, 2139095040
  %v910 = vshrl.u32 %v909, 23
  %v911 = vsub.s32 %v910, 127
  %v912 = vand.u32 2147483647, %v177
  %v913 = vand.u32 %v912, 8388607
  %v914 = vor.u32 %v913, 8388608
  %v915 = vsub.s32 0, %v914
  %v916 = vadd.s32 %v911, 1
  %vm917 = vcmp.gt.s32.totalorder %v916, 0
  %v918 = vsel %vm917, %v916, 0
  %v919 = vshrl.u32 %v918, 5
  %v920 = vand.u32 %v918, 31
  %v921 = vsub.s32 32, %v920
  %v922 = vshrl.u32 683565275, %v921
  %v923 = vshll.u32 683565275, %v920
  %v924 = vshrl.u32 2475754826, %v921
  %v925 = vor.u32 %v923, %v924
  %v926 = vshll.u32 2475754826, %v920
  %v927 = vshrl.u32 2131351028, %v921
  %v928 = vor.u32 %v926, %v927
  %v929 = vshll.u32 2131351028, %v920
  %v930 = vshrl.u32 2102212464, %v921
  %v931 = vor.u32 %v929, %v930
  %v932 = vshll.u32 2102212464, %v920
  %v933 = vshrl.u32 920167782, %v921
  %v934 = vor.u32 %v932, %v933
  %v935 = vshll.u32 920167782, %v920
  %v936 = vshrl.u32 1326507024, %v921
  %v937 = vor.u32 %v935, %v936
  %vm938 = vcmp.lt.s32.totalorder %v919, 1
  %vm939 = vcmp.lt.s32.totalorder %v919, 2
  %vm940 = vcmp.lt.s32.totalorder %v919, 3
  %vm941 = vcmp.lt.s32.totalorder %v919, 4
  %v942 = vsel %vm938, %v922, %v925
  %v943 = vsel %vm941, %v931, 2102212464
  %v944 = vsel %vm940, %v928, %v943
  %v945 = vsel %vm939, %v942, %v944
  %v946 = vsel %vm938, %v925, %v928
  %v947 = vsel %vm941, %v934, 920167782
  %v948 = vsel %vm940, %v931, %v947
  %v949 = vsel %vm939, %v946, %v948
  %v950 = vsel %vm938, %v928, %v931
  %v951 = vsel %vm941, %v937, 1326507024
  %v952 = vsel %vm940, %v934, %v951
  %v953 = vsel %vm939, %v950, %v952
  %v954 = vshll.u32 %v914, 8
  %v955 = vmul.u32.u64.compose %v954, %v953
  %v956 = vextract.low.u32 %v955
  %v957 = vextract.high.u32 %v955
  %v958 = vmul.u32.u64.compose %v954, %v949
  %v959 = vextract.low.u32 %v958
  %v960 = vextract.high.u32 %v958
  %v961 = vmul.u32 %v954, %v945
  %v962 = vadd.s32 %v957, %v959
  %vm963 = vc.u32 %v957, %v959
  %v964 = vadd.s32 %v960, 1
  %v965 = vsel %vm963, %v964, %v960
  %v966 = vadd.s32 %v961, %v965
  %v967 = vadd.s32 %v966, 536870912
  %v968 = vshrl.u32 %v967, 30
  %v969 = vshll.u32 %v968, 30
  %v970 = vsub.s32 %v966, %v969
  %vm971 = vcmp.lt.s32.totalorder %v970, 0
  %v972 = vsub.s32 0, %v970
  %v973 = vsel %vm971, %v972, %v970
  %v974 = vclz %v973
  %v975 = vsub.s32 %v974, 2
  %vm976 = vcmp.gt.s32.totalorder 0, %v975
  %v977 = vsel %vm976, 0, %v975
  %v978 = vsub.s32 32, %v977
  %v979 = vshll.u32 %v970, %v977
  %v980 = vshrl.u32 %v962, %v978
  %v981 = vor.u32 %v979, %v980
  %v982 = vsub.s32 4294967266, %v977
  %v983 = vadd.s32 %v982, 127
  %v984 = vshll.u32 %v983, 23
  %v985 = vor.u32 4788187, %v984
  %v986 = vand.u32 2147483647, %v985
  %v988 = vcvt.s32.f32 %v981
  %v989 = vmul.f32 %v988, %v986
  %v990 = vxor.u32 %v989, 2147483648
  %v991 = vsel %vm908, %v990, %v989
  %v992 = vsub.s32 4, %v968
  %v993 = vsel %vm908, %v992, %v968
  %v994 = vsel %vm907, %v177, %v991
  %v995 = vsel %vm907, 0, %v993
  %v996 = vcosq.f32.pop %v994
  %v997 = vsinq.f32.pop %v994
  %vm998 = vweird.f32 %v177
  %v999 = vadd.s32 %v995, 3
  %v1000 = vand.u32 %v999, 3
  %vm1001 = vcmp.lt.s32.totalorder %v1000, 2
  %vm1002 = vcmp.eq.s32.totalorder %v1000, 0
  %v1003 = vxor.u32 %v997, 2147483648
  %v1004 = vsel %vm1002, %v996, %v1003
  %vm1005 = vcmp.eq.s32.totalorder %v1000, 2
  %v1006 = vxor.u32 %v996, 2147483648
  %v1007 = vsel %vm1005, %v1006, %v997
  %v1008 = vsel %vm1001, %v1004, %v1007
  %v1009 = vsel %vm998, nan, %v1008
  %v1010 = vand.u32 2147483647, %v170
  %vm1011 = vcmp.le.f32.partialorder %v1010, 0.7853982
  %vm1012 = vcmp.lt.s32.totalorder %v170, 0
  %v1013 = vand.u32 %v170, 2139095040
  %v1014 = vshrl.u32 %v1013, 23
  %v1015 = vsub.s32 %v1014, 127
  %v1016 = vand.u32 2147483647, %v170
  %v1017 = vand.u32 %v1016, 8388607
  %v1018 = vor.u32 %v1017, 8388608
  %v1019 = vsub.s32 0, %v1018
  %v1020 = vadd.s32 %v1015, 1
  %vm1021 = vcmp.gt.s32.totalorder %v1020, 0
  %v1022 = vsel %vm1021, %v1020, 0
  %v1023 = vshrl.u32 %v1022, 5
  %v1024 = vand.u32 %v1022, 31
  %v1025 = vsub.s32 32, %v1024
  %v1026 = vshrl.u32 683565275, %v1025
  %v1027 = vshll.u32 683565275, %v1024
  %v1028 = vshrl.u32 2475754826, %v1025
  %v1029 = vor.u32 %v1027, %v1028
  %v1030 = vshll.u32 2475754826, %v1024
  %v1031 = vshrl.u32 2131351028, %v1025
  %v1032 = vor.u32 %v1030, %v1031
  %v1033 = vshll.u32 2131351028, %v1024
  %v1034 = vshrl.u32 2102212464, %v1025
  %v1035 = vor.u32 %v1033, %v1034
  %v1036 = vshll.u32 2102212464, %v1024
  %v1037 = vshrl.u32 920167782, %v1025
  %v1038 = vor.u32 %v1036, %v1037
  %v1039 = vshll.u32 920167782, %v1024
  %v1040 = vshrl.u32 1326507024, %v1025
  %v1041 = vor.u32 %v1039, %v1040
  %vm1042 = vcmp.lt.s32.totalorder %v1023, 1
  %vm1043 = vcmp.lt.s32.totalorder %v1023, 2
  %vm1044 = vcmp.lt.s32.totalorder %v1023, 3
  %vm1045 = vcmp.lt.s32.totalorder %v1023, 4
  %v1046 = vsel %vm1042, %v1026, %v1029
  %v1047 = vsel %vm1045, %v1035, 2102212464
  %v1048 = vsel %vm1044, %v1032, %v1047
  %v1049 = vsel %vm1043, %v1046, %v1048
  %v1050 = vsel %vm1042, %v1029, %v1032
  %v1051 = vsel %vm1045, %v1038, 920167782
  %v1052 = vsel %vm1044, %v1035, %v1051
  %v1053 = vsel %vm1043, %v1050, %v1052
  %v1054 = vsel %vm1042, %v1032, %v1035
  %v1055 = vsel %vm1045, %v1041, 1326507024
  %v1056 = vsel %vm1044, %v1038, %v1055
  %v1057 = vsel %vm1043, %v1054, %v1056
  %v1058 = vshll.u32 %v1018, 8
  %v1059 = vmul.u32.u64.compose %v1058, %v1057
  %v1060 = vextract.low.u32 %v1059
  %v1061 = vextract.high.u32 %v1059
  %v1062 = vmul.u32.u64.compose %v1058, %v1053
  %v1063 = vextract.low.u32 %v1062
  %v1064 = vextract.high.u32 %v1062
  %v1065 = vmul.u32 %v1058, %v1049
  %v1066 = vadd.s32 %v1061, %v1063
  %vm1067 = vc.u32 %v1061, %v1063
  %v1068 = vadd.s32 %v1064, 1
  %v1069 = vsel %vm1067, %v1068, %v1064
  %v1070 = vadd.s32 %v1065, %v1069
  %v1071 = vadd.s32 %v1070, 536870912
  %v1072 = vshrl.u32 %v1071, 30
  %v1073 = vshll.u32 %v1072, 30
  %v1074 = vsub.s32 %v1070, %v1073
  %vm1075 = vcmp.lt.s32.totalorder %v1074, 0
  %v1076 = vsub.s32 0, %v1074
  %v1077 = vsel %vm1075, %v1076, %v1074
  %v1078 = vclz %v1077
  %v1079 = vsub.s32 %v1078, 2
  %vm1080 = vcmp.gt.s32.totalorder 0, %v1079
  %v1081 = vsel %vm1080, 0, %v1079
  %v1082 = vsub.s32 32, %v1081
  %v1083 = vshll.u32 %v1074, %v1081
  %v1084 = vshrl.u32 %v1066, %v1082
  %v1085 = vor.u32 %v1083, %v1084
  %v1086 = vsub.s32 4294967266, %v1081
  %v1087 = vadd.s32 %v1086, 127
  %v1088 = vshll.u32 %v1087, 23
  %v1089 = vor.u32 4788187, %v1088
  %v1090 = vand.u32 2147483647, %v1089
  %v1092 = vcvt.s32.f32 %v1085
  %v1093 = vmul.f32 %v1092, %v1090
  %v1094 = vxor.u32 %v1093, 2147483648
  %v1095 = vsel %vm1012, %v1094, %v1093
  %v1096 = vsub.s32 4, %v1072
  %v1097 = vsel %vm1012, %v1096, %v1072
  %v1098 = vsel %vm1011, %v170, %v1095
  %v1099 = vsel %vm1011, 0, %v1097
  %v1100 = vcosq.f32.pop %v1098
  %v1101 = vsinq.f32.pop %v1098
  %vm1102 = vweird.f32 %v170
  %v1103 = vand.u32 %v1099, 3
  %vm1104 = vcmp.lt.s32.totalorder %v1103, 2
  %vm1105 = vcmp.eq.s32.totalorder %v1103, 0
  %v1106 = vxor.u32 %v1101, 2147483648
  %v1107 = vsel %vm1105, %v1100, %v1106
  %vm1108 = vcmp.eq.s32.totalorder %v1103, 2
  %v1109 = vxor.u32 %v1100, 2147483648
  %v1110 = vsel %vm1108, %v1109, %v1101
  %v1111 = vsel %vm1104, %v1107, %v1110
  %v1112 = vsel %vm1102, nan, %v1111
  %v1113 = vand.u32 2147483647, %v171
  %vm1114 = vcmp.le.f32.partialorder %v1113, 0.7853982
  %vm1115 = vcmp.lt.s32.totalorder %v171, 0
  %v1116 = vand.u32 %v171, 2139095040
  %v1117 = vshrl.u32 %v1116, 23
  %v1118 = vsub.s32 %v1117, 127
  %v1119 = vand.u32 2147483647, %v171
  %v1120 = vand.u32 %v1119, 8388607
  %v1121 = vor.u32 %v1120, 8388608
  %v1122 = vsub.s32 0, %v1121
  %v1123 = vadd.s32 %v1118, 1
  %vm1124 = vcmp.gt.s32.totalorder %v1123, 0
  %v1125 = vsel %vm1124, %v1123, 0
  %v1126 = vshrl.u32 %v1125, 5
  %v1127 = vand.u32 %v1125, 31
  %v1128 = vsub.s32 32, %v1127
  %v1129 = vshrl.u32 683565275, %v1128
  %v1130 = vshll.u32 683565275, %v1127
  %v1131 = vshrl.u32 2475754826, %v1128
  %v1132 = vor.u32 %v1130, %v1131
  %v1133 = vshll.u32 2475754826, %v1127
  %v1134 = vshrl.u32 2131351028, %v1128
  %v1135 = vor.u32 %v1133, %v1134
  %v1136 = vshll.u32 2131351028, %v1127
  %v1137 = vshrl.u32 2102212464, %v1128
  %v1138 = vor.u32 %v1136, %v1137
  %v1139 = vshll.u32 2102212464, %v1127
  %v1140 = vshrl.u32 920167782, %v1128
  %v1141 = vor.u32 %v1139, %v1140
  %v1142 = vshll.u32 920167782, %v1127
  %v1143 = vshrl.u32 1326507024, %v1128
  %v1144 = vor.u32 %v1142, %v1143
  %vm1145 = vcmp.lt.s32.totalorder %v1126, 1
  %vm1146 = vcmp.lt.s32.totalorder %v1126, 2
  %vm1147 = vcmp.lt.s32.totalorder %v1126, 3
  %vm1148 = vcmp.lt.s32.totalorder %v1126, 4
  %v1149 = vsel %vm1145, %v1129, %v1132
  %v1150 = vsel %vm1148, %v1138, 2102212464
  %v1151 = vsel %vm1147, %v1135, %v1150
  %v1152 = vsel %vm1146, %v1149, %v1151
  %v1153 = vsel %vm1145, %v1132, %v1135
  %v1154 = vsel %vm1148, %v1141, 920167782
  %v1155 = vsel %vm1147, %v1138, %v1154
  %v1156 = vsel %vm1146, %v1153, %v1155
  %v1157 = vsel %vm1145, %v1135, %v1138
  %v1158 = vsel %vm1148, %v1144, 1326507024
  %v1159 = vsel %vm1147, %v1141, %v1158
  %v1160 = vsel %vm1146, %v1157, %v1159
  %v1161 = vshll.u32 %v1121, 8
  %v1162 = vmul.u32.u64.compose %v1161, %v1160
  %v1163 = vextract.low.u32 %v1162
  %v1164 = vextract.high.u32 %v1162
  %v1165 = vmul.u32.u64.compose %v1161, %v1156
  %v1166 = vextract.low.u32 %v1165
  %v1167 = vextract.high.u32 %v1165
  %v1168 = vmul.u32 %v1161, %v1152
  %v1169 = vadd.s32 %v1164, %v1166
  %vm1170 = vc.u32 %v1164, %v1166
  %v1171 = vadd.s32 %v1167, 1
  %v1172 = vsel %vm1170, %v1171, %v1167
  %v1173 = vadd.s32 %v1168, %v1172
  %v1174 = vadd.s32 %v1173, 536870912
  %v1175 = vshrl.u32 %v1174, 30
  %v1176 = vshll.u32 %v1175, 30
  %v1177 = vsub.s32 %v1173, %v1176
  %vm1178 = vcmp.lt.s32.totalorder %v1177, 0
  %v1179 = vsub.s32 0, %v1177
  %v1180 = vsel %vm1178, %v1179, %v1177
  %v1181 = vclz %v1180
  %v1182 = vsub.s32 %v1181, 2
  %vm1183 = vcmp.gt.s32.totalorder 0, %v1182
  %v1184 = vsel %vm1183, 0, %v1182
  %v1185 = vsub.s32 32, %v1184
  %v1186 = vshll.u32 %v1177, %v1184
  %v1187 = vshrl.u32 %v1169, %v1185
  %v1188 = vor.u32 %v1186, %v1187
  %v1189 = vsub.s32 4294967266, %v1184
  %v1190 = vadd.s32 %v1189, 127
  %v1191 = vshll.u32 %v1190, 23
  %v1192 = vor.u32 4788187, %v1191
  %v1193 = vand.u32 2147483647, %v1192
  %v1195 = vcvt.s32.f32 %v1188
  %v1196 = vmul.f32 %v1195, %v1193
  %v1197 = vxor.u32 %v1196, 2147483648
  %v1198 = vsel %vm1115, %v1197, %v1196
  %v1199 = vsub.s32 4, %v1175
  %v1200 = vsel %vm1115, %v1199, %v1175
  %v1201 = vsel %vm1114, %v171, %v1198
  %v1202 = vsel %vm1114, 0, %v1200
  %v1203 = vcosq.f32.pop %v1201
  %v1204 = vsinq.f32.pop %v1201
  %vm1205 = vweird.f32 %v171
  %v1206 = vand.u32 %v1202, 3
  %vm1207 = vcmp.lt.s32.totalorder %v1206, 2
  %vm1208 = vcmp.eq.s32.totalorder %v1206, 0
  %v1209 = vxor.u32 %v1204, 2147483648
  %v1210 = vsel %vm1208, %v1203, %v1209
  %vm1211 = vcmp.eq.s32.totalorder %v1206, 2
  %v1212 = vxor.u32 %v1203, 2147483648
  %v1213 = vsel %vm1211, %v1212, %v1204
  %v1214 = vsel %vm1207, %v1210, %v1213
  %v1215 = vsel %vm1205, nan, %v1214
  %v1216 = vand.u32 2147483647, %v172
  %vm1217 = vcmp.le.f32.partialorder %v1216, 0.7853982
  %vm1218 = vcmp.lt.s32.totalorder %v172, 0
  %v1219 = vand.u32 %v172, 2139095040
  %v1220 = vshrl.u32 %v1219, 23
  %v1221 = vsub.s32 %v1220, 127
  %v1222 = vand.u32 2147483647, %v172
  %v1223 = vand.u32 %v1222, 8388607
  %v1224 = vor.u32 %v1223, 8388608
  %v1225 = vsub.s32 0, %v1224
  %v1226 = vadd.s32 %v1221, 1
  %vm1227 = vcmp.gt.s32.totalorder %v1226, 0
  %v1228 = vsel %vm1227, %v1226, 0
  %v1229 = vshrl.u32 %v1228, 5
  %v1230 = vand.u32 %v1228, 31
  %v1231 = vsub.s32 32, %v1230
  %v1232 = vshrl.u32 683565275, %v1231
  %v1233 = vshll.u32 683565275, %v1230
  %v1234 = vshrl.u32 2475754826, %v1231
  %v1235 = vor.u32 %v1233, %v1234
  %v1236 = vshll.u32 2475754826, %v1230
  %v1237 = vshrl.u32 2131351028, %v1231
  %v1238 = vor.u32 %v1236, %v1237
  %v1239 = vshll.u32 2131351028, %v1230
  %v1240 = vshrl.u32 2102212464, %v1231
  %v1241 = vor.u32 %v1239, %v1240
  %v1242 = vshll.u32 2102212464, %v1230
  %v1243 = vshrl.u32 920167782, %v1231
  %v1244 = vor.u32 %v1242, %v1243
  %v1245 = vshll.u32 920167782, %v1230
  %v1246 = vshrl.u32 1326507024, %v1231
  %v1247 = vor.u32 %v1245, %v1246
  %vm1248 = vcmp.lt.s32.totalorder %v1229, 1
  %vm1249 = vcmp.lt.s32.totalorder %v1229, 2
  %vm1250 = vcmp.lt.s32.totalorder %v1229, 3
  %vm1251 = vcmp.lt.s32.totalorder %v1229, 4
  %v1252 = vsel %vm1248, %v1232, %v1235
  %v1253 = vsel %vm1251, %v1241, 2102212464
  %v1254 = vsel %vm1250, %v1238, %v1253
  %v1255 = vsel %vm1249, %v1252, %v1254
  %v1256 = vsel %vm1248, %v1235, %v1238
  %v1257 = vsel %vm1251, %v1244, 920167782
  %v1258 = vsel %vm1250, %v1241, %v1257
  %v1259 = vsel %vm1249, %v1256, %v1258
  %v1260 = vsel %vm1248, %v1238, %v1241
  %v1261 = vsel %vm1251, %v1247, 1326507024
  %v1262 = vsel %vm1250, %v1244, %v1261
  %v1263 = vsel %vm1249, %v1260, %v1262
  %v1264 = vshll.u32 %v1224, 8
  %v1265 = vmul.u32.u64.compose %v1264, %v1263
  %v1266 = vextract.low.u32 %v1265
  %v1267 = vextract.high.u32 %v1265
  %v1268 = vmul.u32.u64.compose %v1264, %v1259
  %v1269 = vextract.low.u32 %v1268
  %v1270 = vextract.high.u32 %v1268
  %v1271 = vmul.u32 %v1264, %v1255
  %v1272 = vadd.s32 %v1267, %v1269
  %vm1273 = vc.u32 %v1267, %v1269
  %v1274 = vadd.s32 %v1270, 1
  %v1275 = vsel %vm1273, %v1274, %v1270
  %v1276 = vadd.s32 %v1271, %v1275
  %v1277 = vadd.s32 %v1276, 536870912
  %v1278 = vshrl.u32 %v1277, 30
  %v1279 = vshll.u32 %v1278, 30
  %v1280 = vsub.s32 %v1276, %v1279
  %vm1281 = vcmp.lt.s32.totalorder %v1280, 0
  %v1282 = vsub.s32 0, %v1280
  %v1283 = vsel %vm1281, %v1282, %v1280
  %v1284 = vclz %v1283
  %v1285 = vsub.s32 %v1284, 2
  %vm1286 = vcmp.gt.s32.totalorder 0, %v1285
  %v1287 = vsel %vm1286, 0, %v1285
  %v1288 = vsub.s32 32, %v1287
  %v1289 = vshll.u32 %v1280, %v1287
  %v1290 = vshrl.u32 %v1272, %v1288
  %v1291 = vor.u32 %v1289, %v1290
  %v1292 = vsub.s32 4294967266, %v1287
  %v1293 = vadd.s32 %v1292, 127
  %v1294 = vshll.u32 %v1293, 23
  %v1295 = vor.u32 4788187, %v1294
  %v1296 = vand.u32 2147483647, %v1295
  %v1298 = vcvt.s32.f32 %v1291
  %v1299 = vmul.f32 %v1298, %v1296
  %v1300 = vxor.u32 %v1299, 2147483648
  %v1301 = vsel %vm1218, %v1300, %v1299
  %v1302 = vsub.s32 4, %v1278
  %v1303 = vsel %vm1218, %v1302, %v1278
  %v1304 = vsel %vm1217, %v172, %v1301
  %v1305 = vsel %vm1217, 0, %v1303
  %v1306 = vcosq.f32.pop %v1304
  %v1307 = vsinq.f32.pop %v1304
  %vm1308 = vweird.f32 %v172
  %v1309 = vand.u32 %v1305, 3
  %vm1310 = vcmp.lt.s32.totalorder %v1309, 2
  %vm1311 = vcmp.eq.s32.totalorder %v1309, 0
  %v1312 = vxor.u32 %v1307, 2147483648
  %v1313 = vsel %vm1311, %v1306, %v1312
  %vm1314 = vcmp.eq.s32.totalorder %v1309, 2
  %v1315 = vxor.u32 %v1306, 2147483648
  %v1316 = vsel %vm1314, %v1315, %v1307
  %v1317 = vsel %vm1310, %v1313, %v1316
  %v1318 = vsel %vm1308, nan, %v1317
  %v1319 = vand.u32 2147483647, %v173
  %vm1320 = vcmp.le.f32.partialorder %v1319, 0.7853982
  %vm1321 = vcmp.lt.s32.totalorder %v173, 0
  %v1322 = vand.u32 %v173, 2139095040
  %v1323 = vshrl.u32 %v1322, 23
  %v1324 = vsub.s32 %v1323, 127
  %v1325 = vand.u32 2147483647, %v173
  %v1326 = vand.u32 %v1325, 8388607
  %v1327 = vor.u32 %v1326, 8388608
  %v1328 = vsub.s32 0, %v1327
  %v1329 = vadd.s32 %v1324, 1
  %vm1330 = vcmp.gt.s32.totalorder %v1329, 0
  %v1331 = vsel %vm1330, %v1329, 0
  %v1332 = vshrl.u32 %v1331, 5
  %v1333 = vand.u32 %v1331, 31
  %v1334 = vsub.s32 32, %v1333
  %v1335 = vshrl.u32 683565275, %v1334
  %v1336 = vshll.u32 683565275, %v1333
  %v1337 = vshrl.u32 2475754826, %v1334
  %v1338 = vor.u32 %v1336, %v1337
  %v1339 = vshll.u32 2475754826, %v1333
  %v1340 = vshrl.u32 2131351028, %v1334
  %v1341 = vor.u32 %v1339, %v1340
  %v1342 = vshll.u32 2131351028, %v1333
  %v1343 = vshrl.u32 2102212464, %v1334
  %v1344 = vor.u32 %v1342, %v1343
  %v1345 = vshll.u32 2102212464, %v1333
  %v1346 = vshrl.u32 920167782, %v1334
  %v1347 = vor.u32 %v1345, %v1346
  %v1348 = vshll.u32 920167782, %v1333
  %v1349 = vshrl.u32 1326507024, %v1334
  %v1350 = vor.u32 %v1348, %v1349
  %vm1351 = vcmp.lt.s32.totalorder %v1332, 1
  %vm1352 = vcmp.lt.s32.totalorder %v1332, 2
  %vm1353 = vcmp.lt.s32.totalorder %v1332, 3
  %vm1354 = vcmp.lt.s32.totalorder %v1332, 4
  %v1355 = vsel %vm1351, %v1335, %v1338
  %v1356 = vsel %vm1354, %v1344, 2102212464
  %v1357 = vsel %vm1353, %v1341, %v1356
  %v1358 = vsel %vm1352, %v1355, %v1357
  %v1359 = vsel %vm1351, %v1338, %v1341
  %v1360 = vsel %vm1354, %v1347, 920167782
  %v1361 = vsel %vm1353, %v1344, %v1360
  %v1362 = vsel %vm1352, %v1359, %v1361
  %v1363 = vsel %vm1351, %v1341, %v1344
  %v1364 = vsel %vm1354, %v1350, 1326507024
  %v1365 = vsel %vm1353, %v1347, %v1364
  %v1366 = vsel %vm1352, %v1363, %v1365
  %v1367 = vshll.u32 %v1327, 8
  %v1368 = vmul.u32.u64.compose %v1367, %v1366
  %v1369 = vextract.low.u32 %v1368
  %v1370 = vextract.high.u32 %v1368
  %v1371 = vmul.u32.u64.compose %v1367, %v1362
  %v1372 = vextract.low.u32 %v1371
  %v1373 = vextract.high.u32 %v1371
  %v1374 = vmul.u32 %v1367, %v1358
  %v1375 = vadd.s32 %v1370, %v1372
  %vm1376 = vc.u32 %v1370, %v1372
  %v1377 = vadd.s32 %v1373, 1
  %v1378 = vsel %vm1376, %v1377, %v1373
  %v1379 = vadd.s32 %v1374, %v1378
  %v1380 = vadd.s32 %v1379, 536870912
  %v1381 = vshrl.u32 %v1380, 30
  %v1382 = vshll.u32 %v1381, 30
  %v1383 = vsub.s32 %v1379, %v1382
  %vm1384 = vcmp.lt.s32.totalorder %v1383, 0
  %v1385 = vsub.s32 0, %v1383
  %v1386 = vsel %vm1384, %v1385, %v1383
  %v1387 = vclz %v1386
  %v1388 = vsub.s32 %v1387, 2
  %vm1389 = vcmp.gt.s32.totalorder 0, %v1388
  %v1390 = vsel %vm1389, 0, %v1388
  %v1391 = vsub.s32 32, %v1390
  %v1392 = vshll.u32 %v1383, %v1390
  %v1393 = vshrl.u32 %v1375, %v1391
  %v1394 = vor.u32 %v1392, %v1393
  %v1395 = vsub.s32 4294967266, %v1390
  %v1396 = vadd.s32 %v1395, 127
  %v1397 = vshll.u32 %v1396, 23
  %v1398 = vor.u32 4788187, %v1397
  %v1399 = vand.u32 2147483647, %v1398
  %v1401 = vcvt.s32.f32 %v1394
  %v1402 = vmul.f32 %v1401, %v1399
  %v1403 = vxor.u32 %v1402, 2147483648
  %v1404 = vsel %vm1321, %v1403, %v1402
  %v1405 = vsub.s32 4, %v1381
  %v1406 = vsel %vm1321, %v1405, %v1381
  %v1407 = vsel %vm1320, %v173, %v1404
  %v1408 = vsel %vm1320, 0, %v1406
  %v1409 = vcosq.f32.pop %v1407
  %v1410 = vsinq.f32.pop %v1407
  %vm1411 = vweird.f32 %v173
  %v1412 = vand.u32 %v1408, 3
  %vm1413 = vcmp.lt.s32.totalorder %v1412, 2
  %vm1414 = vcmp.eq.s32.totalorder %v1412, 0
  %v1415 = vxor.u32 %v1410, 2147483648
  %v1416 = vsel %vm1414, %v1409, %v1415
  %vm1417 = vcmp.eq.s32.totalorder %v1412, 2
  %v1418 = vxor.u32 %v1409, 2147483648
  %v1419 = vsel %vm1417, %v1418, %v1410
  %v1420 = vsel %vm1413, %v1416, %v1419
  %v1421 = vsel %vm1411, nan, %v1420
  %v1422 = vand.u32 2147483647, %v174
  %vm1423 = vcmp.le.f32.partialorder %v1422, 0.7853982
  %vm1424 = vcmp.lt.s32.totalorder %v174, 0
  %v1425 = vand.u32 %v174, 2139095040
  %v1426 = vshrl.u32 %v1425, 23
  %v1427 = vsub.s32 %v1426, 127
  %v1428 = vand.u32 2147483647, %v174
  %v1429 = vand.u32 %v1428, 8388607
  %v1430 = vor.u32 %v1429, 8388608
  %v1431 = vsub.s32 0, %v1430
  %v1432 = vadd.s32 %v1427, 1
  %vm1433 = vcmp.gt.s32.totalorder %v1432, 0
  %v1434 = vsel %vm1433, %v1432, 0
  %v1435 = vshrl.u32 %v1434, 5
  %v1436 = vand.u32 %v1434, 31
  %v1437 = vsub.s32 32, %v1436
  %v1438 = vshrl.u32 683565275, %v1437
  %v1439 = vshll.u32 683565275, %v1436
  %v1440 = vshrl.u32 2475754826, %v1437
  %v1441 = vor.u32 %v1439, %v1440
  %v1442 = vshll.u32 2475754826, %v1436
  %v1443 = vshrl.u32 2131351028, %v1437
  %v1444 = vor.u32 %v1442, %v1443
  %v1445 = vshll.u32 2131351028, %v1436
  %v1446 = vshrl.u32 2102212464, %v1437
  %v1447 = vor.u32 %v1445, %v1446
  %v1448 = vshll.u32 2102212464, %v1436
  %v1449 = vshrl.u32 920167782, %v1437
  %v1450 = vor.u32 %v1448, %v1449
  %v1451 = vshll.u32 920167782, %v1436
  %v1452 = vshrl.u32 1326507024, %v1437
  %v1453 = vor.u32 %v1451, %v1452
  %vm1454 = vcmp.lt.s32.totalorder %v1435, 1
  %vm1455 = vcmp.lt.s32.totalorder %v1435, 2
  %vm1456 = vcmp.lt.s32.totalorder %v1435, 3
  %vm1457 = vcmp.lt.s32.totalorder %v1435, 4
  %v1458 = vsel %vm1454, %v1438, %v1441
  %v1459 = vsel %vm1457, %v1447, 2102212464
  %v1460 = vsel %vm1456, %v1444, %v1459
  %v1461 = vsel %vm1455, %v1458, %v1460
  %v1462 = vsel %vm1454, %v1441, %v1444
  %v1463 = vsel %vm1457, %v1450, 920167782
  %v1464 = vsel %vm1456, %v1447, %v1463
  %v1465 = vsel %vm1455, %v1462, %v1464
  %v1466 = vsel %vm1454, %v1444, %v1447
  %v1467 = vsel %vm1457, %v1453, 1326507024
  %v1468 = vsel %vm1456, %v1450, %v1467
  %v1469 = vsel %vm1455, %v1466, %v1468
  %v1470 = vshll.u32 %v1430, 8
  %v1471 = vmul.u32.u64.compose %v1470, %v1469
  %v1472 = vextract.low.u32 %v1471
  %v1473 = vextract.high.u32 %v1471
  %v1474 = vmul.u32.u64.compose %v1470, %v1465
  %v1475 = vextract.low.u32 %v1474
  %v1476 = vextract.high.u32 %v1474
  %v1477 = vmul.u32 %v1470, %v1461
  %v1478 = vadd.s32 %v1473, %v1475
  %vm1479 = vc.u32 %v1473, %v1475
  %v1480 = vadd.s32 %v1476, 1
  %v1481 = vsel %vm1479, %v1480, %v1476
  %v1482 = vadd.s32 %v1477, %v1481
  %v1483 = vadd.s32 %v1482, 536870912
  %v1484 = vshrl.u32 %v1483, 30
  %v1485 = vshll.u32 %v1484, 30
  %v1486 = vsub.s32 %v1482, %v1485
  %vm1487 = vcmp.lt.s32.totalorder %v1486, 0
  %v1488 = vsub.s32 0, %v1486
  %v1489 = vsel %vm1487, %v1488, %v1486
  %v1490 = vclz %v1489
  %v1491 = vsub.s32 %v1490, 2
  %vm1492 = vcmp.gt.s32.totalorder 0, %v1491
  %v1493 = vsel %vm1492, 0, %v1491
  %v1494 = vsub.s32 32, %v1493
  %v1495 = vshll.u32 %v1486, %v1493
  %v1496 = vshrl.u32 %v1478, %v1494
  %v1497 = vor.u32 %v1495, %v1496
  %v1498 = vsub.s32 4294967266, %v1493
  %v1499 = vadd.s32 %v1498, 127
  %v1500 = vshll.u32 %v1499, 23
  %v1501 = vor.u32 4788187, %v1500
  %v1502 = vand.u32 2147483647, %v1501
  %v1504 = vcvt.s32.f32 %v1497
  %v1505 = vmul.f32 %v1504, %v1502
  %v1506 = vxor.u32 %v1505, 2147483648
  %v1507 = vsel %vm1424, %v1506, %v1505
  %v1508 = vsub.s32 4, %v1484
  %v1509 = vsel %vm1424, %v1508, %v1484
  %v1510 = vsel %vm1423, %v174, %v1507
  %v1511 = vsel %vm1423, 0, %v1509
  %v1512 = vcosq.f32.pop %v1510
  %v1513 = vsinq.f32.pop %v1510
  %vm1514 = vweird.f32 %v174
  %v1515 = vand.u32 %v1511, 3
  %vm1516 = vcmp.lt.s32.totalorder %v1515, 2
  %vm1517 = vcmp.eq.s32.totalorder %v1515, 0
  %v1518 = vxor.u32 %v1513, 2147483648
  %v1519 = vsel %vm1517, %v1512, %v1518
  %vm1520 = vcmp.eq.s32.totalorder %v1515, 2
  %v1521 = vxor.u32 %v1512, 2147483648
  %v1522 = vsel %vm1520, %v1521, %v1513
  %v1523 = vsel %vm1516, %v1519, %v1522
  %v1524 = vsel %vm1514, nan, %v1523
  %v1525 = vand.u32 2147483647, %v175
  %vm1526 = vcmp.le.f32.partialorder %v1525, 0.7853982
  %vm1527 = vcmp.lt.s32.totalorder %v175, 0
  %v1528 = vand.u32 %v175, 2139095040
  %v1529 = vshrl.u32 %v1528, 23
  %v1530 = vsub.s32 %v1529, 127
  %v1531 = vand.u32 2147483647, %v175
  %v1532 = vand.u32 %v1531, 8388607
  %v1533 = vor.u32 %v1532, 8388608
  %v1534 = vsub.s32 0, %v1533
  %v1535 = vadd.s32 %v1530, 1
  %vm1536 = vcmp.gt.s32.totalorder %v1535, 0
  %v1537 = vsel %vm1536, %v1535, 0
  %v1538 = vshrl.u32 %v1537, 5
  %v1539 = vand.u32 %v1537, 31
  %v1540 = vsub.s32 32, %v1539
  %v1541 = vshrl.u32 683565275, %v1540
  %v1542 = vshll.u32 683565275, %v1539
  %v1543 = vshrl.u32 2475754826, %v1540
  %v1544 = vor.u32 %v1542, %v1543
  %v1545 = vshll.u32 2475754826, %v1539
  %v1546 = vshrl.u32 2131351028, %v1540
  %v1547 = vor.u32 %v1545, %v1546
  %v1548 = vshll.u32 2131351028, %v1539
  %v1549 = vshrl.u32 2102212464, %v1540
  %v1550 = vor.u32 %v1548, %v1549
  %v1551 = vshll.u32 2102212464, %v1539
  %v1552 = vshrl.u32 920167782, %v1540
  %v1553 = vor.u32 %v1551, %v1552
  %v1554 = vshll.u32 920167782, %v1539
  %v1555 = vshrl.u32 1326507024, %v1540
  %v1556 = vor.u32 %v1554, %v1555
  %vm1557 = vcmp.lt.s32.totalorder %v1538, 1
  %vm1558 = vcmp.lt.s32.totalorder %v1538, 2
  %vm1559 = vcmp.lt.s32.totalorder %v1538, 3
  %vm1560 = vcmp.lt.s32.totalorder %v1538, 4
  %v1561 = vsel %vm1557, %v1541, %v1544
  %v1562 = vsel %vm1560, %v1550, 2102212464
  %v1563 = vsel %vm1559, %v1547, %v1562
  %v1564 = vsel %vm1558, %v1561, %v1563
  %v1565 = vsel %vm1557, %v1544, %v1547
  %v1566 = vsel %vm1560, %v1553, 920167782
  %v1567 = vsel %vm1559, %v1550, %v1566
  %v1568 = vsel %vm1558, %v1565, %v1567
  %v1569 = vsel %vm1557, %v1547, %v1550
  %v1570 = vsel %vm1560, %v1556, 1326507024
  %v1571 = vsel %vm1559, %v1553, %v1570
  %v1572 = vsel %vm1558, %v1569, %v1571
  %v1573 = vshll.u32 %v1533, 8
  %v1574 = vmul.u32.u64.compose %v1573, %v1572
  %v1575 = vextract.low.u32 %v1574
  %v1576 = vextract.high.u32 %v1574
  %v1577 = vmul.u32.u64.compose %v1573, %v1568
  %v1578 = vextract.low.u32 %v1577
  %v1579 = vextract.high.u32 %v1577
  %v1580 = vmul.u32 %v1573, %v1564
  %v1581 = vadd.s32 %v1576, %v1578
  %vm1582 = vc.u32 %v1576, %v1578
  %v1583 = vadd.s32 %v1579, 1
  %v1584 = vsel %vm1582, %v1583, %v1579
  %v1585 = vadd.s32 %v1580, %v1584
  %v1586 = vadd.s32 %v1585, 536870912
  %v1587 = vshrl.u32 %v1586, 30
  %v1588 = vshll.u32 %v1587, 30
  %v1589 = vsub.s32 %v1585, %v1588
  %vm1590 = vcmp.lt.s32.totalorder %v1589, 0
  %v1591 = vsub.s32 0, %v1589
  %v1592 = vsel %vm1590, %v1591, %v1589
  %v1593 = vclz %v1592
  %v1594 = vsub.s32 %v1593, 2
  %vm1595 = vcmp.gt.s32.totalorder 0, %v1594
  %v1596 = vsel %vm1595, 0, %v1594
  %v1597 = vsub.s32 32, %v1596
  %v1598 = vshll.u32 %v1589, %v1596
  %v1599 = vshrl.u32 %v1581, %v1597
  %v1600 = vor.u32 %v1598, %v1599
  %v1601 = vsub.s32 4294967266, %v1596
  %v1602 = vadd.s32 %v1601, 127
  %v1603 = vshll.u32 %v1602, 23
  %v1604 = vor.u32 4788187, %v1603
  %v1605 = vand.u32 2147483647, %v1604
  %v1607 = vcvt.s32.f32 %v1600
  %v1608 = vmul.f32 %v1607, %v1605
  %v1609 = vxor.u32 %v1608, 2147483648
  %v1610 = vsel %vm1527, %v1609, %v1608
  %v1611 = vsub.s32 4, %v1587
  %v1612 = vsel %vm1527, %v1611, %v1587
  %v1613 = vsel %vm1526, %v175, %v1610
  %v1614 = vsel %vm1526, 0, %v1612
  %v1615 = vcosq.f32.pop %v1613
  %v1616 = vsinq.f32.pop %v1613
  %vm1617 = vweird.f32 %v175
  %v1618 = vand.u32 %v1614, 3
  %vm1619 = vcmp.lt.s32.totalorder %v1618, 2
  %vm1620 = vcmp.eq.s32.totalorder %v1618, 0
  %v1621 = vxor.u32 %v1616, 2147483648
  %v1622 = vsel %vm1620, %v1615, %v1621
  %vm1623 = vcmp.eq.s32.totalorder %v1618, 2
  %v1624 = vxor.u32 %v1615, 2147483648
  %v1625 = vsel %vm1623, %v1624, %v1616
  %v1626 = vsel %vm1619, %v1622, %v1625
  %v1627 = vsel %vm1617, nan, %v1626
  %v1628 = vand.u32 2147483647, %v176
  %vm1629 = vcmp.le.f32.partialorder %v1628, 0.7853982
  %vm1630 = vcmp.lt.s32.totalorder %v176, 0
  %v1631 = vand.u32 %v176, 2139095040
  %v1632 = vshrl.u32 %v1631, 23
  %v1633 = vsub.s32 %v1632, 127
  %v1634 = vand.u32 2147483647, %v176
  %v1635 = vand.u32 %v1634, 8388607
  %v1636 = vor.u32 %v1635, 8388608
  %v1637 = vsub.s32 0, %v1636
  %v1638 = vadd.s32 %v1633, 1
  %vm1639 = vcmp.gt.s32.totalorder %v1638, 0
  %v1640 = vsel %vm1639, %v1638, 0
  %v1641 = vshrl.u32 %v1640, 5
  %v1642 = vand.u32 %v1640, 31
  %v1643 = vsub.s32 32, %v1642
  %v1644 = vshrl.u32 683565275, %v1643
  %v1645 = vshll.u32 683565275, %v1642
  %v1646 = vshrl.u32 2475754826, %v1643
  %v1647 = vor.u32 %v1645, %v1646
  %v1648 = vshll.u32 2475754826, %v1642
  %v1649 = vshrl.u32 2131351028, %v1643
  %v1650 = vor.u32 %v1648, %v1649
  %v1651 = vshll.u32 2131351028, %v1642
  %v1652 = vshrl.u32 2102212464, %v1643
  %v1653 = vor.u32 %v1651, %v1652
  %v1654 = vshll.u32 2102212464, %v1642
  %v1655 = vshrl.u32 920167782, %v1643
  %v1656 = vor.u32 %v1654, %v1655
  %v1657 = vshll.u32 920167782, %v1642
  %v1658 = vshrl.u32 1326507024, %v1643
  %v1659 = vor.u32 %v1657, %v1658
  %vm1660 = vcmp.lt.s32.totalorder %v1641, 1
  %vm1661 = vcmp.lt.s32.totalorder %v1641, 2
  %vm1662 = vcmp.lt.s32.totalorder %v1641, 3
  %vm1663 = vcmp.lt.s32.totalorder %v1641, 4
  %v1664 = vsel %vm1660, %v1644, %v1647
  %v1665 = vsel %vm1663, %v1653, 2102212464
  %v1666 = vsel %vm1662, %v1650, %v1665
  %v1667 = vsel %vm1661, %v1664, %v1666
  %v1668 = vsel %vm1660, %v1647, %v1650
  %v1669 = vsel %vm1663, %v1656, 920167782
  %v1670 = vsel %vm1662, %v1653, %v1669
  %v1671 = vsel %vm1661, %v1668, %v1670
  %v1672 = vsel %vm1660, %v1650, %v1653
  %v1673 = vsel %vm1663, %v1659, 1326507024
  %v1674 = vsel %vm1662, %v1656, %v1673
  %v1675 = vsel %vm1661, %v1672, %v1674
  %v1676 = vshll.u32 %v1636, 8
  %v1677 = vmul.u32.u64.compose %v1676, %v1675
  %v1678 = vextract.low.u32 %v1677
  %v1679 = vextract.high.u32 %v1677
  %v1680 = vmul.u32.u64.compose %v1676, %v1671
  %v1681 = vextract.low.u32 %v1680
  %v1682 = vextract.high.u32 %v1680
  %v1683 = vmul.u32 %v1676, %v1667
  %v1684 = vadd.s32 %v1679, %v1681
  %vm1685 = vc.u32 %v1679, %v1681
  %v1686 = vadd.s32 %v1682, 1
  %v1687 = vsel %vm1685, %v1686, %v1682
  %v1688 = vadd.s32 %v1683, %v1687
  %v1689 = vadd.s32 %v1688, 536870912
  %v1690 = vshrl.u32 %v1689, 30
  %v1691 = vshll.u32 %v1690, 30
  %v1692 = vsub.s32 %v1688, %v1691
  %vm1693 = vcmp.lt.s32.totalorder %v1692, 0
  %v1694 = vsub.s32 0, %v1692
  %v1695 = vsel %vm1693, %v1694, %v1692
  %v1696 = vclz %v1695
  %v1697 = vsub.s32 %v1696, 2
  %vm1698 = vcmp.gt.s32.totalorder 0, %v1697
  %v1699 = vsel %vm1698, 0, %v1697
  %v1700 = vsub.s32 32, %v1699
  %v1701 = vshll.u32 %v1692, %v1699
  %v1702 = vshrl.u32 %v1684, %v1700
  %v1703 = vor.u32 %v1701, %v1702
  %v1704 = vsub.s32 4294967266, %v1699
  %v1705 = vadd.s32 %v1704, 127
  %v1706 = vshll.u32 %v1705, 23
  %v1707 = vor.u32 4788187, %v1706
  %v1708 = vand.u32 2147483647, %v1707
  %v1710 = vcvt.s32.f32 %v1703
  %v1711 = vmul.f32 %v1710, %v1708
  %v1712 = vxor.u32 %v1711, 2147483648
  %v1713 = vsel %vm1630, %v1712, %v1711
  %v1714 = vsub.s32 4, %v1690
  %v1715 = vsel %vm1630, %v1714, %v1690
  %v1716 = vsel %vm1629, %v176, %v1713
  %v1717 = vsel %vm1629, 0, %v1715
  %v1718 = vcosq.f32.pop %v1716
  %v1719 = vsinq.f32.pop %v1716
  %vm1720 = vweird.f32 %v176
  %v1721 = vand.u32 %v1717, 3
  %vm1722 = vcmp.lt.s32.totalorder %v1721, 2
  %vm1723 = vcmp.eq.s32.totalorder %v1721, 0
  %v1724 = vxor.u32 %v1719, 2147483648
  %v1725 = vsel %vm1723, %v1718, %v1724
  %vm1726 = vcmp.eq.s32.totalorder %v1721, 2
  %v1727 = vxor.u32 %v1718, 2147483648
  %v1728 = vsel %vm1726, %v1727, %v1719
  %v1729 = vsel %vm1722, %v1725, %v1728
  %v1730 = vsel %vm1720, nan, %v1729
  %v1731 = vand.u32 2147483647, %v177
  %vm1732 = vcmp.le.f32.partialorder %v1731, 0.7853982
  %vm1733 = vcmp.lt.s32.totalorder %v177, 0
  %v1734 = vand.u32 %v177, 2139095040
  %v1735 = vshrl.u32 %v1734, 23
  %v1736 = vsub.s32 %v1735, 127
  %v1737 = vand.u32 2147483647, %v177
  %v1738 = vand.u32 %v1737, 8388607
  %v1739 = vor.u32 %v1738, 8388608
  %v1740 = vsub.s32 0, %v1739
  %v1741 = vadd.s32 %v1736, 1
  %vm1742 = vcmp.gt.s32.totalorder %v1741, 0
  %v1743 = vsel %vm1742, %v1741, 0
  %v1744 = vshrl.u32 %v1743, 5
  %v1745 = vand.u32 %v1743, 31
  %v1746 = vsub.s32 32, %v1745
  %v1747 = vshrl.u32 683565275, %v1746
  %v1748 = vshll.u32 683565275, %v1745
  %v1749 = vshrl.u32 2475754826, %v1746
  %v1750 = vor.u32 %v1748, %v1749
  %v1751 = vshll.u32 2475754826, %v1745
  %v1752 = vshrl.u32 2131351028, %v1746
  %v1753 = vor.u32 %v1751, %v1752
  %v1754 = vshll.u32 2131351028, %v1745
  %v1755 = vshrl.u32 2102212464, %v1746
  %v1756 = vor.u32 %v1754, %v1755
  %v1757 = vshll.u32 2102212464, %v1745
  %v1758 = vshrl.u32 920167782, %v1746
  %v1759 = vor.u32 %v1757, %v1758
  %v1760 = vshll.u32 920167782, %v1745
  %v1761 = vshrl.u32 1326507024, %v1746
  %v1762 = vor.u32 %v1760, %v1761
  %vm1763 = vcmp.lt.s32.totalorder %v1744, 1
  %vm1764 = vcmp.lt.s32.totalorder %v1744, 2
  %vm1765 = vcmp.lt.s32.totalorder %v1744, 3
  %vm1766 = vcmp.lt.s32.totalorder %v1744, 4
  %v1767 = vsel %vm1763, %v1747, %v1750
  %v1768 = vsel %vm1766, %v1756, 2102212464
  %v1769 = vsel %vm1765, %v1753, %v1768
  %v1770 = vsel %vm1764, %v1767, %v1769
  %v1771 = vsel %vm1763, %v1750, %v1753
  %v1772 = vsel %vm1766, %v1759, 920167782
  %v1773 = vsel %vm1765, %v1756, %v1772
  %v1774 = vsel %vm1764, %v1771, %v1773
  %v1775 = vsel %vm1763, %v1753, %v1756
  %v1776 = vsel %vm1766, %v1762, 1326507024
  %v1777 = vsel %vm1765, %v1759, %v1776
  %v1778 = vsel %vm1764, %v1775, %v1777
  %v1779 = vshll.u32 %v1739, 8
  %v1780 = vmul.u32.u64.compose %v1779, %v1778
  %v1781 = vextract.low.u32 %v1780
  %v1782 = vextract.high.u32 %v1780
  %v1783 = vmul.u32.u64.compose %v1779, %v1774
  %v1784 = vextract.low.u32 %v1783
  %v1785 = vextract.high.u32 %v1783
  %v1786 = vmul.u32 %v1779, %v1770
  %v1787 = vadd.s32 %v1782, %v1784
  %vm1788 = vc.u32 %v1782, %v1784
  %v1789 = vadd.s32 %v1785, 1
  %v1790 = vsel %vm1788, %v1789, %v1785
  %v1791 = vadd.s32 %v1786, %v1790
  %v1792 = vadd.s32 %v1791, 536870912
  %v1793 = vshrl.u32 %v1792, 30
  %v1794 = vshll.u32 %v1793, 30
  %v1795 = vsub.s32 %v1791, %v1794
  %vm1796 = vcmp.lt.s32.totalorder %v1795, 0
  %v1797 = vsub.s32 0, %v1795
  %v1798 = vsel %vm1796, %v1797, %v1795
  %v1799 = vclz %v1798
  %v1800 = vsub.s32 %v1799, 2
  %vm1801 = vcmp.gt.s32.totalorder 0, %v1800
  %v1802 = vsel %vm1801, 0, %v1800
  %v1803 = vsub.s32 32, %v1802
  %v1804 = vshll.u32 %v1795, %v1802
  %v1805 = vshrl.u32 %v1787, %v1803
  %v1806 = vor.u32 %v1804, %v1805
  %v1807 = vsub.s32 4294967266, %v1802
  %v1808 = vadd.s32 %v1807, 127
  %v1809 = vshll.u32 %v1808, 23
  %v1810 = vor.u32 4788187, %v1809
  %v1811 = vand.u32 2147483647, %v1810
  %v1813 = vcvt.s32.f32 %v1806
  %v1814 = vmul.f32 %v1813, %v1811
  %v1815 = vxor.u32 %v1814, 2147483648
  %v1816 = vsel %vm1733, %v1815, %v1814
  %v1817 = vsub.s32 4, %v1793
  %v1818 = vsel %vm1733, %v1817, %v1793
  %v1819 = vsel %vm1732, %v177, %v1816
  %v1820 = vsel %vm1732, 0, %v1818
  %v1821 = vcosq.f32.pop %v1819
  %v1822 = vsinq.f32.pop %v1819
  %vm1823 = vweird.f32 %v177
  %v1824 = vand.u32 %v1820, 3
  %vm1825 = vcmp.lt.s32.totalorder %v1824, 2
  %vm1826 = vcmp.eq.s32.totalorder %v1824, 0
  %v1827 = vxor.u32 %v1822, 2147483648
  %v1828 = vsel %vm1826, %v1821, %v1827
  %vm1829 = vcmp.eq.s32.totalorder %v1824, 2
  %v1830 = vxor.u32 %v1821, 2147483648
  %v1831 = vsel %vm1829, %v1830, %v1822
  %v1832 = vsel %vm1825, %v1828, %v1831
  %v1833 = vsel %vm1823, nan, %v1832
  %1842 = vrot.lane.b32.xlu0 %v1112, 8
  %v1843 = vpop.permute.xlu0 %1842
  %1844 = vrot.lane.b32.xlu0 %v1215, 8
  %v1845 = vpop.permute.xlu0 %1844
  %1846 = vrot.lane.b32.xlu0 %v1318, 8
  %v1847 = vpop.permute.xlu0 %1846
  %1848 = vrot.lane.b32.xlu0 %v1421, 8
  %v1849 = vpop.permute.xlu0 %1848
  %1850 = vrot.lane.b32.xlu0 %v1524, 8
  %v1851 = vpop.permute.xlu0 %1850
  %1852 = vrot.lane.b32.xlu0 %v1627, 8
  %v1853 = vpop.permute.xlu0 %1852
  %1854 = vrot.lane.b32.xlu0 %v1730, 8
  %v1855 = vpop.permute.xlu0 %1854
  %1856 = vrot.lane.b32.xlu0 %v1833, 8
  %v1857 = vpop.permute.xlu0 %1856
  %v1866 = vsel %vm29, %v281, %v1843
  %v1867 = vsel %vm29, %v385, %v1845
  %v1868 = vsel %vm29, %v489, %v1847
  %v1869 = vsel %vm29, %v593, %v1849
  %v1870 = vsel %vm29, %v697, %v1851
  %v1871 = vsel %vm29, %v801, %v1853
  %v1872 = vsel %vm29, %v905, %v1855
  %v1873 = vsel %vm29, %v1009, %v1857
  %v1874 = vpack.c.bf16 %v1867, %v1866
  %v1875 = vpack.c.bf16 %v1869, %v1868
  %v1876 = vpack.c.bf16 %v1871, %v1870
  %v1877 = vpack.c.bf16 %v1873, %v1872
  %v1878 = vlaneseq
  %v1879 = vshrl.u32 %v1878, 7
  %v1880 = vsub.s32 2, %v1879
  %v1881 = vrot.slane %v19, %v1880
  %v1884 = vunpack.c.l.b16 %v21
  %v1885 = vunpack.c.l.b16 %v22
  %v1886 = vpack.c.b16 %v1885, %v1884
  %vm1888 = vcmask 130048
  %v1890 = vsel %vm1888, %v1874, 0
  %v1893 = vsel %vm1888, %v1875, 0
  %v1896 = vsel %vm1888, %v1876, 0
  %v1899 = vsel %vm1888, %v1877, 0
  %1901 = vmatprep.subr.bf16.mxu0 0
  %1902 = vmatpush1.bf16.msra.mxu0 %v1886
  %1903 = vmatprep.subr.bf16.mxu0 0
  %1904 = vmatpush1.bf16.msra.mxu0 0
  %1905 = vmatprep.subr.bf16.mxu0 0
  %1906 = vmatpush1.bf16.msra.mxu0 0
  %1907 = vmatprep.subr.bf16.mxu0 0
  %1908 = vmatpush1.bf16.msra.mxu0 0
  %1909 = vmatprep.subr.bf16.mxu0 0
  %1910 = vmatpush1.bf16.msra.mxu0 0
  %1911 = vmatprep.subr.bf16.mxu0 0
  %1912 = vmatpush1.bf16.msra.mxu0 0
  %1913 = vmatprep.subr.bf16.mxu0 0
  %1914 = vmatpush1.bf16.msra.mxu0 0
  %1915 = vmatprep.subr.bf16.mxu0 0
  %1916 = vmatpush1.bf16.msra.mxu0 0
  %1917 = vmatprep.subr.bf16.mxu0 0
  %1918 = vmatpush1.bf16.msra.mxu0 0
  %1919 = vmatprep.subr.bf16.mxu0 0
  %1920 = vmatpush1.bf16.msra.mxu0 0
  %1921 = vmatprep.subr.bf16.mxu0 0
  %1922 = vmatpush1.bf16.msra.mxu0 0
  %1923 = vmatprep.subr.bf16.mxu0 0
  %1924 = vmatpush1.bf16.msra.mxu0 0
  %1925 = vmatprep.subr.bf16.mxu0 0
  %1926 = vmatpush1.bf16.msra.mxu0 0
  %1927 = vmatprep.subr.bf16.mxu0 0
  %1928 = vmatpush1.bf16.msra.mxu0 0
  %1929 = vmatprep.subr.bf16.mxu0 0
  %1930 = vmatpush1.bf16.msra.mxu0 0
  %1931 = vmatprep.subr.bf16.mxu0 0
  %1932 = vmatpush1.bf16.msra.mxu0 0
  %1933 = vmatprep.mubr.bf16.mxu0 0
  %1934 = vmatmul.mubr.bf16.gmra.mrb[0].mxu0 %v1890
  %v1935 = vpop.f32.mrb[0].mxu0
  %v1936 = vadd.f32 %v1881, %v1935
  %v1937 = vpop.f32.mrb[0].mxu0
  %v1938 = vpop.f32.mrb[0].mxu0
  %v1939 = vadd.f32 %v1881, %v1938
  %v1940 = vpop.f32.mrb[0].mxu0
  %1941 = vmatprep.mubr.bf16.mxu0 0
  %1942 = vmatmul.mubr.bf16.gmra.mrb[0].mxu0 %v1893
  %v1943 = vpop.f32.mrb[0].mxu0
  %v1944 = vadd.f32 %v1881, %v1943
  %v1945 = vpop.f32.mrb[0].mxu0
  %v1946 = vpop.f32.mrb[0].mxu0
  %v1947 = vadd.f32 %v1881, %v1946
  %v1948 = vpop.f32.mrb[0].mxu0
  %1949 = vmatprep.mubr.bf16.mxu0 0
  %1950 = vmatmul.mubr.bf16.gmra.mrb[0].mxu0 %v1896
  %v1951 = vpop.f32.mrb[0].mxu0
  %v1952 = vadd.f32 %v1881, %v1951
  %v1953 = vpop.f32.mrb[0].mxu0
  %v1954 = vpop.f32.mrb[0].mxu0
  %v1955 = vadd.f32 %v1881, %v1954
  %v1956 = vpop.f32.mrb[0].mxu0
  %1957 = vmatprep.mubr.bf16.mxu0 0
  %1958 = vmatmul.mubr.bf16.gmra.mrb[0].mxu0 %v1899
  %v1959 = vpop.f32.mrb[0].mxu0
  %v1960 = vadd.f32 %v1881, %v1959
  %v1961 = vpop.f32.mrb[0].mxu0
  %v1962 = vpop.f32.mrb[0].mxu0
  %v1963 = vadd.f32 %v1881, %v1962
  %v1964 = vpop.f32.mrb[0].mxu0
  %1965 = vdwg.mxu0
  %v1967 = vsel %vm29, 0, 0
  %vm1969 = vcmask 1043456
  %v1971 = vsel %vm1969, %v23, 0
  %1973 = vmatprep.subr.bf16.mxu0 0
  %1974 = vmatpush1.bf16.msra.mxu0 %v1971
  %1975 = vmatprep.subr.bf16.mxu0 0
  %1976 = vmatpush1.bf16.msra.mxu0 0
  %1977 = vmatprep.subr.bf16.mxu0 0
  %1978 = vmatpush1.bf16.msra.mxu0 0
  %1979 = vmatprep.subr.bf16.mxu0 0
  %1980 = vmatpush1.bf16.msra.mxu0 0
  %1981 = vmatprep.subr.bf16.mxu0 0
  %1982 = vmatpush1.bf16.msra.mxu0 0
  %1983 = vmatprep.subr.bf16.mxu0 0
  %1984 = vmatpush1.bf16.msra.mxu0 0
  %1985 = vmatprep.subr.bf16.mxu0 0
  %1986 = vmatpush1.bf16.msra.mxu0 0
  %1987 = vmatprep.subr.bf16.mxu0 0
  %1988 = vmatpush1.bf16.msra.mxu0 0
  %1989 = vmatprep.subr.bf16.mxu0 0
  %1990 = vmatpush1.bf16.msra.mxu0 0
  %1991 = vmatprep.subr.bf16.mxu0 0
  %1992 = vmatpush1.bf16.msra.mxu0 0
  %1993 = vmatprep.subr.bf16.mxu0 0
  %1994 = vmatpush1.bf16.msra.mxu0 0
  %1995 = vmatprep.subr.bf16.mxu0 0
  %1996 = vmatpush1.bf16.msra.mxu0 0
  %1997 = vmatprep.subr.bf16.mxu0 0
  %1998 = vmatpush1.bf16.msra.mxu0 0
  %1999 = vmatprep.subr.bf16.mxu0 0
  %2000 = vmatpush1.bf16.msra.mxu0 0
  %2001 = vmatprep.subr.bf16.mxu0 0
  %2002 = vmatpush1.bf16.msra.mxu0 0
  %2003 = vmatprep.subr.bf16.mxu0 0
  %2004 = vmatpush1.bf16.msra.mxu0 0
  %2005 = vmatprep.mubr.bf16.mxu0 0
  %2006 = vmatmul.mubr.bf16.gmra.mrb[0].mxu0 %v1967
  %v2007 = vpop.f32.mrb[0].mxu0
  %v2008 = vadd.f32 0.0, %v2007
  %v2009 = vpop.f32.mrb[0].mxu0
  %v2010 = vpop.f32.mrb[0].mxu0
  %v2011 = vpop.f32.mrb[0].mxu0
  %2012 = vdwg.mxu0
  %v2013 = vadd.f32 %v1936, %v2008
  %v2014 = vxor.u32 %v2013, 2147483648
  %v2015 = vmul.f32 %v2014, 1.442695
  %v2016 = vpow.pop %v2015
  %v2017 = vadd.f32 %v2016, 1.0
  %v2018 = vrcp.pop %v2017
  %v2019 = vmul.f32 1.0, %v2018
  %v2020 = vlaneseq
  %v2021 = vshrl.u32 %v2020, 7
  %v2022 = vsub.s32 3, %v2021
  %v2023 = vrot.slane %v19, %v2022
  %2025 = vrot.lane.b32.xlu0 %v2023, 16
  %v2026 = vpop.permute.xlu0 %2025
  %v2028 = vadd.f32 %v2008, %v2026
  %2030 = vrot.lane.b32.xlu0 %v2028, 112
  %v2031 = vpop.permute.xlu0 %2030
  %v2033 = vmul.f32 %v2019, %v2031
  %2035 = vrot.lane.b32.xlu0 %v2033, 16
  %v2036 = vpop.permute.xlu0 %2035
  %v2038 = vadd.f32 %v1936, %v2036
  %v2039 = vtanh.pop %v2038
  %v2040 = vsub.f32 1.0, %v2019
  %2042 = vrot.lane.b32.xlu0 %v2039, 120
  %v2043 = vpop.permute.xlu0 %2042
  %v2045 = vmul.f32 %v2040, %v2043
  %v2046 = vmul.f32 %v2019, 0.0
  %v2047 = vadd.f32 %v2045, %v2046
  %v2048 = vlaneseq
  %v2049 = vshrl.u32 %v2048, 7
  %v2050 = vsub.s32 4, %v2049
  %v2051 = vrot.slane %v19, %v2050
  %2053 = vrot.lane.b32.xlu0 %v2051, 8
  %v2054 = vpop.permute.xlu0 %2053
  %v2056 = vmul.f32 %v2047, %v2054
  %v2057 = vadd.f32 %v2056, 0.0
  %v2058 = vpack.c.bf16 %v2047, %v2047
  %2060 = vrot.lane.b32.xlu0 %v2058, 120
  %v2061 = vpop.permute.xlu0 %2060
  %v2063 = vsel %vm29, %v2061, 0
  %2065 = vmatprep.subr.bf16.mxu0 0
  %2066 = vmatpush1.bf16.msra.mxu0 %v1971
  %2067 = vmatprep.subr.bf16.mxu0 0
  %2068 = vmatpush1.bf16.msra.mxu0 0
  %2069 = vmatprep.subr.bf16.mxu0 0
  %2070 = vmatpush1.bf16.msra.mxu0 0
  %2071 = vmatprep.subr.bf16.mxu0 0
  %2072 = vmatpush1.bf16.msra.mxu0 0
  %2073 = vmatprep.subr.bf16.mxu0 0
  %2074 = vmatpush1.bf16.msra.mxu0 0
  %2075 = vmatprep.subr.bf16.mxu0 0
  %2076 = vmatpush1.bf16.msra.mxu0 0
  %2077 = vmatprep.subr.bf16.mxu0 0
  %2078 = vmatpush1.bf16.msra.mxu0 0
  %2079 = vmatprep.subr.bf16.mxu0 0
  %2080 = vmatpush1.bf16.msra.mxu0 0
  %2081 = vmatprep.subr.bf16.mxu0 0
  %2082 = vmatpush1.bf16.msra.mxu0 0
  %2083 = vmatprep.subr.bf16.mxu0 0
  %2084 = vmatpush1.bf16.msra.mxu0 0
  %2085 = vmatprep.subr.bf16.mxu0 0
  %2086 = vmatpush1.bf16.msra.mxu0 0
  %2087 = vmatprep.subr.bf16.mxu0 0
  %2088 = vmatpush1.bf16.msra.mxu0 0
  %2089 = vmatprep.subr.bf16.mxu0 0
  %2090 = vmatpush1.bf16.msra.mxu0 0
  %2091 = vmatprep.subr.bf16.mxu0 0
  %2092 = vmatpush1.bf16.msra.mxu0 0
  %2093 = vmatprep.subr.bf16.mxu0 0
  %2094 = vmatpush1.bf16.msra.mxu0 0
  %2095 = vmatprep.subr.bf16.mxu0 0
  %2096 = vmatpush1.bf16.msra.mxu0 0
  %2097 = vmatprep.mubr.bf16.mxu0 0
  %2098 = vmatmul.mubr.bf16.gmra.mrb[0].mxu0 %v2063
  %v2099 = vpop.f32.mrb[0].mxu0
  %v2100 = vadd.f32 0.0, %v2099
  %v2101 = vpop.f32.mrb[0].mxu0
  %v2102 = vpop.f32.mrb[0].mxu0
  %v2103 = vpop.f32.mrb[0].mxu0
  %2104 = vdwg.mxu0
  %v2105 = vadd.f32 %v1939, %v2100
  %v2106 = vxor.u32 %v2105, 2147483648
  %v2107 = vmul.f32 %v2106, 1.442695
  %v2108 = vpow.pop %v2107
  %v2109 = vadd.f32 %v2108, 1.0
  %v2110 = vrcp.pop %v2109
  %v2111 = vmul.f32 1.0, %v2110
  %v2112 = vadd.f32 %v2100, %v2026
  %2114 = vrot.lane.b32.xlu0 %v2112, 112
  %v2115 = vpop.permute.xlu0 %2114
  %v2117 = vmul.f32 %v2111, %v2115
  %2119 = vrot.lane.b32.xlu0 %v2117, 16
  %v2120 = vpop.permute.xlu0 %2119
  %v2122 = vadd.f32 %v1939, %v2120
  %v2123 = vtanh.pop %v2122
  %v2124 = vsub.f32 1.0, %v2111
  %2126 = vrot.lane.b32.xlu0 %v2123, 120
  %v2127 = vpop.permute.xlu0 %2126
  %v2129 = vmul.f32 %v2124, %v2127
  %v2130 = vmul.f32 %v2111, %v2047
  %v2131 = vadd.f32 %v2129, %v2130
  %v2132 = vlaneseq
  %v2133 = vshrl.u32 %v2132, 7
  %v2134 = vsub.s32 5, %v2133
  %v2135 = vrot.slane %v19, %v2134
  %2137 = vrot.lane.b32.xlu0 %v2135, 8
  %v2138 = vpop.permute.xlu0 %2137
  %v2140 = vmul.f32 %v2131, %v2138
  %v2141 = vadd.f32 %v2057, %v2140
  %v2142 = vpack.c.bf16 %v2131, %v2131
  %2144 = vrot.lane.b32.xlu0 %v2142, 120
  %v2145 = vpop.permute.xlu0 %2144
  %v2147 = vsel %vm29, %v2145, 0
  %2149 = vmatprep.subr.bf16.mxu0 0
  %2150 = vmatpush1.bf16.msra.mxu0 %v1971
  %2151 = vmatprep.subr.bf16.mxu0 0
  %2152 = vmatpush1.bf16.msra.mxu0 0
  %2153 = vmatprep.subr.bf16.mxu0 0
  %2154 = vmatpush1.bf16.msra.mxu0 0
  %2155 = vmatprep.subr.bf16.mxu0 0
  %2156 = vmatpush1.bf16.msra.mxu0 0
  %2157 = vmatprep.subr.bf16.mxu0 0
  %2158 = vmatpush1.bf16.msra.mxu0 0
  %2159 = vmatprep.subr.bf16.mxu0 0
  %2160 = vmatpush1.bf16.msra.mxu0 0
  %2161 = vmatprep.subr.bf16.mxu0 0
  %2162 = vmatpush1.bf16.msra.mxu0 0
  %2163 = vmatprep.subr.bf16.mxu0 0
  %2164 = vmatpush1.bf16.msra.mxu0 0
  %2165 = vmatprep.subr.bf16.mxu0 0
  %2166 = vmatpush1.bf16.msra.mxu0 0
  %2167 = vmatprep.subr.bf16.mxu0 0
  %2168 = vmatpush1.bf16.msra.mxu0 0
  %2169 = vmatprep.subr.bf16.mxu0 0
  %2170 = vmatpush1.bf16.msra.mxu0 0
  %2171 = vmatprep.subr.bf16.mxu0 0
  %2172 = vmatpush1.bf16.msra.mxu0 0
  %2173 = vmatprep.subr.bf16.mxu0 0
  %2174 = vmatpush1.bf16.msra.mxu0 0
  %2175 = vmatprep.subr.bf16.mxu0 0
  %2176 = vmatpush1.bf16.msra.mxu0 0
  %2177 = vmatprep.subr.bf16.mxu0 0
  %2178 = vmatpush1.bf16.msra.mxu0 0
  %2179 = vmatprep.subr.bf16.mxu0 0
  %2180 = vmatpush1.bf16.msra.mxu0 0
  %2181 = vmatprep.mubr.bf16.mxu0 0
  %2182 = vmatmul.mubr.bf16.gmra.mrb[0].mxu0 %v2147
  %v2183 = vpop.f32.mrb[0].mxu0
  %v2184 = vadd.f32 0.0, %v2183
  %v2185 = vpop.f32.mrb[0].mxu0
  %v2186 = vpop.f32.mrb[0].mxu0
  %v2187 = vpop.f32.mrb[0].mxu0
  %2188 = vdwg.mxu0
  %v2189 = vadd.f32 %v1944, %v2184
  %v2190 = vxor.u32 %v2189, 2147483648
  %v2191 = vmul.f32 %v2190, 1.442695
  %v2192 = vpow.pop %v2191
  %v2193 = vadd.f32 %v2192, 1.0
  %v2194 = vrcp.pop %v2193
  %v2195 = vmul.f32 1.0, %v2194
  %v2196 = vadd.f32 %v2184, %v2026
  %2198 = vrot.lane.b32.xlu0 %v2196, 112
  %v2199 = vpop.permute.xlu0 %2198
  %v2201 = vmul.f32 %v2195, %v2199
  %2203 = vrot.lane.b32.xlu0 %v2201, 16
  %v2204 = vpop.permute.xlu0 %2203
  %v2206 = vadd.f32 %v1944, %v2204
  %v2207 = vtanh.pop %v2206
  %v2208 = vsub.f32 1.0, %v2195
  %2210 = vrot.lane.b32.xlu0 %v2207, 120
  %v2211 = vpop.permute.xlu0 %2210
  %v2213 = vmul.f32 %v2208, %v2211
  %v2214 = vmul.f32 %v2195, %v2131
  %v2215 = vadd.f32 %v2213, %v2214
  %v2216 = vlaneseq
  %v2217 = vshrl.u32 %v2216, 7
  %v2218 = vsub.s32 6, %v2217
  %v2219 = vrot.slane %v19, %v2218
  %2221 = vrot.lane.b32.xlu0 %v2219, 8
  %v2222 = vpop.permute.xlu0 %2221
  %v2224 = vmul.f32 %v2215, %v2222
  %v2225 = vadd.f32 %v2141, %v2224
  %v2226 = vpack.c.bf16 %v2215, %v2215
  %2228 = vrot.lane.b32.xlu0 %v2226, 120
  %v2229 = vpop.permute.xlu0 %2228
  %v2231 = vsel %vm29, %v2229, 0
  %2233 = vmatprep.subr.bf16.mxu0 0
  %2234 = vmatpush1.bf16.msra.mxu0 %v1971
  %2235 = vmatprep.subr.bf16.mxu0 0
  %2236 = vmatpush1.bf16.msra.mxu0 0
  %2237 = vmatprep.subr.bf16.mxu0 0
  %2238 = vmatpush1.bf16.msra.mxu0 0
  %2239 = vmatprep.subr.bf16.mxu0 0
  %2240 = vmatpush1.bf16.msra.mxu0 0
  %2241 = vmatprep.subr.bf16.mxu0 0
  %2242 = vmatpush1.bf16.msra.mxu0 0
  %2243 = vmatprep.subr.bf16.mxu0 0
  %2244 = vmatpush1.bf16.msra.mxu0 0
  %2245 = vmatprep.subr.bf16.mxu0 0
  %2246 = vmatpush1.bf16.msra.mxu0 0
  %2247 = vmatprep.subr.bf16.mxu0 0
  %2248 = vmatpush1.bf16.msra.mxu0 0
  %2249 = vmatprep.subr.bf16.mxu0 0
  %2250 = vmatpush1.bf16.msra.mxu0 0
  %2251 = vmatprep.subr.bf16.mxu0 0
  %2252 = vmatpush1.bf16.msra.mxu0 0
  %2253 = vmatprep.subr.bf16.mxu0 0
  %2254 = vmatpush1.bf16.msra.mxu0 0
  %2255 = vmatprep.subr.bf16.mxu0 0
  %2256 = vmatpush1.bf16.msra.mxu0 0
  %2257 = vmatprep.subr.bf16.mxu0 0
  %2258 = vmatpush1.bf16.msra.mxu0 0
  %2259 = vmatprep.subr.bf16.mxu0 0
  %2260 = vmatpush1.bf16.msra.mxu0 0
  %2261 = vmatprep.subr.bf16.mxu0 0
  %2262 = vmatpush1.bf16.msra.mxu0 0
  %2263 = vmatprep.subr.bf16.mxu0 0
  %2264 = vmatpush1.bf16.msra.mxu0 0
  %2265 = vmatprep.mubr.bf16.mxu0 0
  %2266 = vmatmul.mubr.bf16.gmra.mrb[0].mxu0 %v2231
  %v2267 = vpop.f32.mrb[0].mxu0
  %v2268 = vadd.f32 0.0, %v2267
  %v2269 = vpop.f32.mrb[0].mxu0
  %v2270 = vpop.f32.mrb[0].mxu0
  %v2271 = vpop.f32.mrb[0].mxu0
  %2272 = vdwg.mxu0
  %v2273 = vadd.f32 %v1947, %v2268
  %v2274 = vxor.u32 %v2273, 2147483648
  %v2275 = vmul.f32 %v2274, 1.442695
  %v2276 = vpow.pop %v2275
  %v2277 = vadd.f32 %v2276, 1.0
  %v2278 = vrcp.pop %v2277
  %v2279 = vmul.f32 1.0, %v2278
  %v2280 = vadd.f32 %v2268, %v2026
  %2282 = vrot.lane.b32.xlu0 %v2280, 112
  %v2283 = vpop.permute.xlu0 %2282
  %v2285 = vmul.f32 %v2279, %v2283
  %2287 = vrot.lane.b32.xlu0 %v2285, 16
  %v2288 = vpop.permute.xlu0 %2287
  %v2290 = vadd.f32 %v1947, %v2288
  %v2291 = vtanh.pop %v2290
  %v2292 = vsub.f32 1.0, %v2279
  %2294 = vrot.lane.b32.xlu0 %v2291, 120
  %v2295 = vpop.permute.xlu0 %2294
  %v2297 = vmul.f32 %v2292, %v2295
  %v2298 = vmul.f32 %v2279, %v2215
  %v2299 = vadd.f32 %v2297, %v2298
  %v2300 = vlaneseq
  %v2301 = vshrl.u32 %v2300, 7
  %v2302 = vsub.s32 7, %v2301
  %v2303 = vrot.slane %v19, %v2302
  %2305 = vrot.lane.b32.xlu0 %v2303, 8
  %v2306 = vpop.permute.xlu0 %2305
  %v2308 = vmul.f32 %v2299, %v2306
  %v2309 = vadd.f32 %v2225, %v2308
  %v2310 = vpack.c.bf16 %v2299, %v2299
  %2312 = vrot.lane.b32.xlu0 %v2310, 120
  %v2313 = vpop.permute.xlu0 %2312
  %v2315 = vsel %vm29, %v2313, 0
  %2317 = vmatprep.subr.bf16.mxu0 0
  %2318 = vmatpush1.bf16.msra.mxu0 %v1971
  %2319 = vmatprep.subr.bf16.mxu0 0
  %2320 = vmatpush1.bf16.msra.mxu0 0
  %2321 = vmatprep.subr.bf16.mxu0 0
  %2322 = vmatpush1.bf16.msra.mxu0 0
  %2323 = vmatprep.subr.bf16.mxu0 0
  %2324 = vmatpush1.bf16.msra.mxu0 0
  %2325 = vmatprep.subr.bf16.mxu0 0
  %2326 = vmatpush1.bf16.msra.mxu0 0
  %2327 = vmatprep.subr.bf16.mxu0 0
  %2328 = vmatpush1.bf16.msra.mxu0 0
  %2329 = vmatprep.subr.bf16.mxu0 0
  %2330 = vmatpush1.bf16.msra.mxu0 0
  %2331 = vmatprep.subr.bf16.mxu0 0
  %2332 = vmatpush1.bf16.msra.mxu0 0
  %2333 = vmatprep.subr.bf16.mxu0 0
  %2334 = vmatpush1.bf16.msra.mxu0 0
  %2335 = vmatprep.subr.bf16.mxu0 0
  %2336 = vmatpush1.bf16.msra.mxu0 0
  %2337 = vmatprep.subr.bf16.mxu0 0
  %2338 = vmatpush1.bf16.msra.mxu0 0
  %2339 = vmatprep.subr.bf16.mxu0 0
  %2340 = vmatpush1.bf16.msra.mxu0 0
  %2341 = vmatprep.subr.bf16.mxu0 0
  %2342 = vmatpush1.bf16.msra.mxu0 0
  %2343 = vmatprep.subr.bf16.mxu0 0
  %2344 = vmatpush1.bf16.msra.mxu0 0
  %2345 = vmatprep.subr.bf16.mxu0 0
  %2346 = vmatpush1.bf16.msra.mxu0 0
  %2347 = vmatprep.subr.bf16.mxu0 0
  %2348 = vmatpush1.bf16.msra.mxu0 0
  %2349 = vmatprep.mubr.bf16.mxu0 0
  %2350 = vmatmul.mubr.bf16.gmra.mrb[0].mxu0 %v2315
  %v2351 = vpop.f32.mrb[0].mxu0
  %v2352 = vadd.f32 0.0, %v2351
  %v2353 = vpop.f32.mrb[0].mxu0
  %v2354 = vpop.f32.mrb[0].mxu0
  %v2355 = vpop.f32.mrb[0].mxu0
  %2356 = vdwg.mxu0
  %v2357 = vadd.f32 %v1952, %v2352
  %v2358 = vxor.u32 %v2357, 2147483648
  %v2359 = vmul.f32 %v2358, 1.442695
  %v2360 = vpow.pop %v2359
  %v2361 = vadd.f32 %v2360, 1.0
  %v2362 = vrcp.pop %v2361
  %v2363 = vmul.f32 1.0, %v2362
  %v2364 = vadd.f32 %v2352, %v2026
  %2366 = vrot.lane.b32.xlu0 %v2364, 112
  %v2367 = vpop.permute.xlu0 %2366
  %v2369 = vmul.f32 %v2363, %v2367
  %2371 = vrot.lane.b32.xlu0 %v2369, 16
  %v2372 = vpop.permute.xlu0 %2371
  %v2374 = vadd.f32 %v1952, %v2372
  %v2375 = vtanh.pop %v2374
  %v2376 = vsub.f32 1.0, %v2363
  %2378 = vrot.lane.b32.xlu0 %v2375, 120
  %v2379 = vpop.permute.xlu0 %2378
  %v2381 = vmul.f32 %v2376, %v2379
  %v2382 = vmul.f32 %v2363, %v2299
  %v2383 = vadd.f32 %v2381, %v2382
  %v2384 = vlaneseq
  %v2385 = vshrl.u32 %v2384, 7
  %v2386 = vsub.s32 0, %v2385
  %v2387 = vrot.slane %v20, %v2386
  %2389 = vrot.lane.b32.xlu0 %v2387, 8
  %v2390 = vpop.permute.xlu0 %2389
  %v2392 = vmul.f32 %v2383, %v2390
  %v2393 = vadd.f32 %v2309, %v2392
  %v2394 = vpack.c.bf16 %v2383, %v2383
  %2396 = vrot.lane.b32.xlu0 %v2394, 120
  %v2397 = vpop.permute.xlu0 %2396
  %v2399 = vsel %vm29, %v2397, 0
  %2401 = vmatprep.subr.bf16.mxu0 0
  %2402 = vmatpush1.bf16.msra.mxu0 %v1971
  %2403 = vmatprep.subr.bf16.mxu0 0
  %2404 = vmatpush1.bf16.msra.mxu0 0
  %2405 = vmatprep.subr.bf16.mxu0 0
  %2406 = vmatpush1.bf16.msra.mxu0 0
  %2407 = vmatprep.subr.bf16.mxu0 0
  %2408 = vmatpush1.bf16.msra.mxu0 0
  %2409 = vmatprep.subr.bf16.mxu0 0
  %2410 = vmatpush1.bf16.msra.mxu0 0
  %2411 = vmatprep.subr.bf16.mxu0 0
  %2412 = vmatpush1.bf16.msra.mxu0 0
  %2413 = vmatprep.subr.bf16.mxu0 0
  %2414 = vmatpush1.bf16.msra.mxu0 0
  %2415 = vmatprep.subr.bf16.mxu0 0
  %2416 = vmatpush1.bf16.msra.mxu0 0
  %2417 = vmatprep.subr.bf16.mxu0 0
  %2418 = vmatpush1.bf16.msra.mxu0 0
  %2419 = vmatprep.subr.bf16.mxu0 0
  %2420 = vmatpush1.bf16.msra.mxu0 0
  %2421 = vmatprep.subr.bf16.mxu0 0
  %2422 = vmatpush1.bf16.msra.mxu0 0
  %2423 = vmatprep.subr.bf16.mxu0 0
  %2424 = vmatpush1.bf16.msra.mxu0 0
  %2425 = vmatprep.subr.bf16.mxu0 0
  %2426 = vmatpush1.bf16.msra.mxu0 0
  %2427 = vmatprep.subr.bf16.mxu0 0
  %2428 = vmatpush1.bf16.msra.mxu0 0
  %2429 = vmatprep.subr.bf16.mxu0 0
  %2430 = vmatpush1.bf16.msra.mxu0 0
  %2431 = vmatprep.subr.bf16.mxu0 0
  %2432 = vmatpush1.bf16.msra.mxu0 0
  %2433 = vmatprep.mubr.bf16.mxu0 0
  %2434 = vmatmul.mubr.bf16.gmra.mrb[0].mxu0 %v2399
  %v2435 = vpop.f32.mrb[0].mxu0
  %v2436 = vadd.f32 0.0, %v2435
  %v2437 = vpop.f32.mrb[0].mxu0
  %v2438 = vpop.f32.mrb[0].mxu0
  %v2439 = vpop.f32.mrb[0].mxu0
  %2440 = vdwg.mxu0
  %v2441 = vadd.f32 %v1955, %v2436
  %v2442 = vxor.u32 %v2441, 2147483648
  %v2443 = vmul.f32 %v2442, 1.442695
  %v2444 = vpow.pop %v2443
  %v2445 = vadd.f32 %v2444, 1.0
  %v2446 = vrcp.pop %v2445
  %v2447 = vmul.f32 1.0, %v2446
  %v2448 = vadd.f32 %v2436, %v2026
  %2450 = vrot.lane.b32.xlu0 %v2448, 112
  %v2451 = vpop.permute.xlu0 %2450
  %v2453 = vmul.f32 %v2447, %v2451
  %2455 = vrot.lane.b32.xlu0 %v2453, 16
  %v2456 = vpop.permute.xlu0 %2455
  %v2458 = vadd.f32 %v1955, %v2456
  %v2459 = vtanh.pop %v2458
  %v2460 = vsub.f32 1.0, %v2447
  %2462 = vrot.lane.b32.xlu0 %v2459, 120
  %v2463 = vpop.permute.xlu0 %2462
  %v2465 = vmul.f32 %v2460, %v2463
  %v2466 = vmul.f32 %v2447, %v2383
  %v2467 = vadd.f32 %v2465, %v2466
  %v2468 = vlaneseq
  %v2469 = vshrl.u32 %v2468, 7
  %v2470 = vsub.s32 1, %v2469
  %v2471 = vrot.slane %v20, %v2470
  %2473 = vrot.lane.b32.xlu0 %v2471, 8
  %v2474 = vpop.permute.xlu0 %2473
  %v2476 = vmul.f32 %v2467, %v2474
  %v2477 = vadd.f32 %v2393, %v2476
  %v2478 = vpack.c.bf16 %v2467, %v2467
  %2480 = vrot.lane.b32.xlu0 %v2478, 120
  %v2481 = vpop.permute.xlu0 %2480
  %v2483 = vsel %vm29, %v2481, 0
  %2485 = vmatprep.subr.bf16.mxu0 0
  %2486 = vmatpush1.bf16.msra.mxu0 %v1971
  %2487 = vmatprep.subr.bf16.mxu0 0
  %2488 = vmatpush1.bf16.msra.mxu0 0
  %2489 = vmatprep.subr.bf16.mxu0 0
  %2490 = vmatpush1.bf16.msra.mxu0 0
  %2491 = vmatprep.subr.bf16.mxu0 0
  %2492 = vmatpush1.bf16.msra.mxu0 0
  %2493 = vmatprep.subr.bf16.mxu0 0
  %2494 = vmatpush1.bf16.msra.mxu0 0
  %2495 = vmatprep.subr.bf16.mxu0 0
  %2496 = vmatpush1.bf16.msra.mxu0 0
  %2497 = vmatprep.subr.bf16.mxu0 0
  %2498 = vmatpush1.bf16.msra.mxu0 0
  %2499 = vmatprep.subr.bf16.mxu0 0
  %2500 = vmatpush1.bf16.msra.mxu0 0
  %2501 = vmatprep.subr.bf16.mxu0 0
  %2502 = vmatpush1.bf16.msra.mxu0 0
  %2503 = vmatprep.subr.bf16.mxu0 0
  %2504 = vmatpush1.bf16.msra.mxu0 0
  %2505 = vmatprep.subr.bf16.mxu0 0
  %2506 = vmatpush1.bf16.msra.mxu0 0
  %2507 = vmatprep.subr.bf16.mxu0 0
  %2508 = vmatpush1.bf16.msra.mxu0 0
  %2509 = vmatprep.subr.bf16.mxu0 0
  %2510 = vmatpush1.bf16.msra.mxu0 0
  %2511 = vmatprep.subr.bf16.mxu0 0
  %2512 = vmatpush1.bf16.msra.mxu0 0
  %2513 = vmatprep.subr.bf16.mxu0 0
  %2514 = vmatpush1.bf16.msra.mxu0 0
  %2515 = vmatprep.subr.bf16.mxu0 0
  %2516 = vmatpush1.bf16.msra.mxu0 0
  %2517 = vmatprep.mubr.bf16.mxu0 0
  %2518 = vmatmul.mubr.bf16.gmra.mrb[0].mxu0 %v2483
  %v2519 = vpop.f32.mrb[0].mxu0
  %v2520 = vadd.f32 0.0, %v2519
  %v2521 = vpop.f32.mrb[0].mxu0
  %v2522 = vpop.f32.mrb[0].mxu0
  %v2523 = vpop.f32.mrb[0].mxu0
  %2524 = vdwg.mxu0
  %v2525 = vadd.f32 %v1960, %v2520
  %v2526 = vxor.u32 %v2525, 2147483648
  %v2527 = vmul.f32 %v2526, 1.442695
  %v2528 = vpow.pop %v2527
  %v2529 = vadd.f32 %v2528, 1.0
  %v2530 = vrcp.pop %v2529
  %v2531 = vmul.f32 1.0, %v2530
  %v2532 = vadd.f32 %v2520, %v2026
  %2534 = vrot.lane.b32.xlu0 %v2532, 112
  %v2535 = vpop.permute.xlu0 %2534
  %v2537 = vmul.f32 %v2531, %v2535
  %2539 = vrot.lane.b32.xlu0 %v2537, 16
  %v2540 = vpop.permute.xlu0 %2539
  %v2542 = vadd.f32 %v1960, %v2540
  %v2543 = vtanh.pop %v2542
  %v2544 = vsub.f32 1.0, %v2531
  %2546 = vrot.lane.b32.xlu0 %v2543, 120
  %v2547 = vpop.permute.xlu0 %2546
  %v2549 = vmul.f32 %v2544, %v2547
  %v2550 = vmul.f32 %v2531, %v2467
  %v2551 = vadd.f32 %v2549, %v2550
  %v2552 = vlaneseq
  %v2553 = vshrl.u32 %v2552, 7
  %v2554 = vsub.s32 2, %v2553
  %v2555 = vrot.slane %v20, %v2554
  %2557 = vrot.lane.b32.xlu0 %v2555, 8
  %v2558 = vpop.permute.xlu0 %2557
  %v2560 = vmul.f32 %v2551, %v2558
  %v2561 = vadd.f32 %v2477, %v2560
  %v2562 = vpack.c.bf16 %v2551, %v2551
  %2564 = vrot.lane.b32.xlu0 %v2562, 120
  %v2565 = vpop.permute.xlu0 %2564
  %v2567 = vsel %vm29, %v2565, 0
  %2569 = vmatprep.subr.bf16.mxu0 0
  %2570 = vmatpush1.bf16.msra.mxu0 %v1971
  %2571 = vmatprep.subr.bf16.mxu0 0
  %2572 = vmatpush1.bf16.msra.mxu0 0
  %2573 = vmatprep.subr.bf16.mxu0 0
  %2574 = vmatpush1.bf16.msra.mxu0 0
  %2575 = vmatprep.subr.bf16.mxu0 0
  %2576 = vmatpush1.bf16.msra.mxu0 0
  %2577 = vmatprep.subr.bf16.mxu0 0
  %2578 = vmatpush1.bf16.msra.mxu0 0
  %2579 = vmatprep.subr.bf16.mxu0 0
  %2580 = vmatpush1.bf16.msra.mxu0 0
  %2581 = vmatprep.subr.bf16.mxu0 0
  %2582 = vmatpush1.bf16.msra.mxu0 0
  %2583 = vmatprep.subr.bf16.mxu0 0
  %2584 = vmatpush1.bf16.msra.mxu0 0
  %2585 = vmatprep.subr.bf16.mxu0 0
  %2586 = vmatpush1.bf16.msra.mxu0 0
  %2587 = vmatprep.subr.bf16.mxu0 0
  %2588 = vmatpush1.bf16.msra.mxu0 0
  %2589 = vmatprep.subr.bf16.mxu0 0
  %2590 = vmatpush1.bf16.msra.mxu0 0
  %2591 = vmatprep.subr.bf16.mxu0 0
  %2592 = vmatpush1.bf16.msra.mxu0 0
  %2593 = vmatprep.subr.bf16.mxu0 0
  %2594 = vmatpush1.bf16.msra.mxu0 0
  %2595 = vmatprep.subr.bf16.mxu0 0
  %2596 = vmatpush1.bf16.msra.mxu0 0
  %2597 = vmatprep.subr.bf16.mxu0 0
  %2598 = vmatpush1.bf16.msra.mxu0 0
  %2599 = vmatprep.subr.bf16.mxu0 0
  %2600 = vmatpush1.bf16.msra.mxu0 0
  %2601 = vmatprep.mubr.bf16.mxu0 0
  %2602 = vmatmul.mubr.bf16.gmra.mrb[0].mxu0 %v2567
  %v2603 = vpop.f32.mrb[0].mxu0
  %v2604 = vadd.f32 0.0, %v2603
  %v2605 = vpop.f32.mrb[0].mxu0
  %v2606 = vpop.f32.mrb[0].mxu0
  %v2607 = vpop.f32.mrb[0].mxu0
  %2608 = vdwg.mxu0
  %v2609 = vadd.f32 %v1963, %v2604
  %v2610 = vxor.u32 %v2609, 2147483648
  %v2611 = vmul.f32 %v2610, 1.442695
  %v2612 = vpow.pop %v2611
  %v2613 = vadd.f32 %v2612, 1.0
  %v2614 = vrcp.pop %v2613
  %v2615 = vmul.f32 1.0, %v2614
  %v2616 = vadd.f32 %v2604, %v2026
  %2618 = vrot.lane.b32.xlu0 %v2616, 112
  %v2619 = vpop.permute.xlu0 %2618
  %v2621 = vmul.f32 %v2615, %v2619
  %2623 = vrot.lane.b32.xlu0 %v2621, 16
  %v2624 = vpop.permute.xlu0 %2623
  %v2626 = vadd.f32 %v1963, %v2624
  %v2627 = vtanh.pop %v2626
  %v2628 = vsub.f32 1.0, %v2615
  %2630 = vrot.lane.b32.xlu0 %v2627, 120
  %v2631 = vpop.permute.xlu0 %2630
  %v2633 = vmul.f32 %v2628, %v2631
  %v2634 = vmul.f32 %v2615, %v2551
  %v2635 = vadd.f32 %v2633, %v2634
  %v2636 = vlaneseq
  %v2637 = vshrl.u32 %v2636, 7
  %v2638 = vsub.s32 3, %v2637
  %v2639 = vrot.slane %v20, %v2638
  %2641 = vrot.lane.b32.xlu0 %v2639, 8
  %v2642 = vpop.permute.xlu0 %2641
  %v2644 = vmul.f32 %v2635, %v2642
  %v2645 = vadd.f32 %v2561, %v2644
  %2647 = vrot.lane.b32.xlu0 %v2645, 120
  %v2648 = vpop.permute.xlu0 %2647
  %v2650 = vadd.f32 %v117, %v2648
  %v2651 = vlaneseq
  %v2652 = vshrl.u32 %v2651, 7
  %v2653 = vsub.s32 4, %v2652
  %v2654 = vrot.slane %v20, %v2653
  %v2655 = vadd.f32 %v2650, %v2654
  %2657 = vrot.lane.b32.xlu0 %v2655, 8
  %v2658 = vpop.permute.xlu0 %2657
  %v2660 = vsel %vm29, %v24, %v2658
  %2661 = vst.msk [vmem:[%s4] sm:$0xff] %vm1888, %v2660
  // Predicated region
  $region18: #{temporal_realnvp_flow.1} parent=0 // pred_check
    _
  $region19: #{temporal_realnvp_flow.1} parent=0 // pred_check_branch
    %2663 = sbr.rel (0) target = $region21
  $region20: #{temporal_realnvp_flow.1} parent=0 // pred_region
    _
  $region21: #{temporal_realnvp_flow.1} parent=0 // pred_fallthru
    _
  // Predicated region
  $region22: #{temporal_realnvp_flow.1} parent=0 // pred_check
    _
  $region23: #{temporal_realnvp_flow.1} parent=0 // pred_check_branch
    %2665 = sbr.rel (0) target = $region25
  $region24: #{temporal_realnvp_flow.1} parent=0 // pred_region
    _
  $region25: #{temporal_realnvp_flow.1} parent=0 // pred_fallthru
    _

</llo_original>
